<compile_context>
chip_gen: v5e
topology: v5e:2x2
jax: 0.10.0
libtpu: 0.0.40
codegen_flags: <defaults>
</compile_context>

<pallas_src>
import numpy as np
import jax
import jax.numpy as jnp
from jax.experimental import pallas as pl
from jax.experimental.pallas import tpu as pltpu

K = 5
PAD = 2
BN_EPS = 1e-5


# ---------------- fused two-layer Pallas kernel ----------------

def make_fused_kernel(B, H, W, C1, C2):
    """Conv+BN+ReLU+Pool (x2 layers) for a batch block of B images, all inside one kernel.

    x_ref  : [B, H, W]                       f32 input block (Cin == 1, lane-dense rows)
    w1_ref : [K, W+4, W*C1]                  bf16 banded layer-1 weights (BN folded)
    b1_ref : [1, W*C1]                       f32 lane-tiled layer-1 bias
    w2_ref : [K, (W/2+4)*C1, (W/2)*C2]       bf16 banded layer-2 weights (BN folded)
    b2_ref : [1, (W/2)*C2]                   f32 lane-tiled layer-2 bias
    o_ref  : [B, H/4, (W/4)*C2]              f32 pooled layer-2 output, lane-dense (128 lanes)
    x1p_ref/x2p_ref : VMEM scratch holding the zero-padded inputs of each conv.
    """
    Hp1, Wp1 = H // 2, W // 2
    Hp2, Wp2 = Hp1 // 2, Wp1 // 2
    bf16, f32 = jnp.bfloat16, jnp.float32

    def kernel(x_ref, w1_ref, b1_ref, w2_ref, b2_ref, o_ref, x1p_ref, x2p_ref):

        def band_conv(src, h_out, w_slab_ref):
            # conv(5x5, pad=2) as K accumulated MXU matmuls: rows = (b, h), lanes = (w_in, cin);
            # kw/cin taps are folded into the banded weight slab, so no im2col relayout at all.
            lanes = src.shape[-1]
            acc = None
            for kh in range(K):
                lhs = src[:, kh:kh + h_out, :].reshape(B * h_out, lanes).astype(bf16)
                part = jnp.dot(lhs, w_slab_ref[kh], preferred_element_type=f32)
                acc = part if acc is None else acc + part
            return acc                                            # [B*h_out, w_out*cout]

        # ---- layer 1: zero halo lives only in VMEM (no wrapper-side jnp.pad) ----
        x1p_ref[...] = jnp.zeros_like(x1p_ref)
        x1p_ref[:, PAD:PAD + H, PAD:PAD + W] = x_ref[...]
        y1 = band_conv(x1p_ref[...], H, w1_ref)                   # [B*H, W*C1]
        y1 = jnp.maximum(y1 + b1_ref[...], 0.0)

        # fused MaxPool2d(2): pure halves-maxima on the lane-dense (w, c) layout
        y1 = y1.reshape(B, Hp1, 2 * W * C1)
        m1 = jnp.maximum(y1[:, :, :W * C1], y1[:, :, W * C1:])    # max over dh
        m1 = m1.reshape(B, Hp1, Wp1, 2 * C1)
        p1 = jnp.maximum(m1[:, :, :, :C1], m1[:, :, :, C1:])      # max over dw -> [B,8,8,16]

        # ---- layer 2: pooled activation stays in VMEM (never round-trips HBM) ----
        x2p_ref[...] = jnp.zeros_like(x2p_ref)
        x2p_ref[:, PAD:PAD + Hp1, PAD * C1:(PAD + Wp1) * C1] = p1.reshape(B, Hp1, Wp1 * C1)
        y2 = band_conv(x2p_ref[...], Hp1, w2_ref)                 # [B*Hp1, Wp1*C2]
        y2 = jnp.maximum(y2 + b2_ref[...], 0.0)

        y2 = y2.reshape(B, Hp2, 2 * Wp1 * C2)
        m2 = jnp.maximum(y2[:, :, :Wp1 * C2], y2[:, :, Wp1 * C2:])
        m2 = m2.reshape(B, Hp2, Wp2, 2 * C2)
        p2 = jnp.maximum(m2[:, :, :, :C2], m2[:, :, :, C2:])      # [B, 4, 4, 32]

        o_ref[...] = p2.reshape(B, Hp2, Wp2 * C2)                 # lane-dense (128-lane) store

    return kernel


# ---------------- wrapper ----------------

def fold_bn_to_band(w, b, gamma, beta, mean, var, out_w):
    """Fold eval-mode BN into the conv, laid out as a banded weight slab.

    slab[kh, (wo+kw)*Cin + ci, wo*Cout + co] = scale[co] * w[co, ci, kh, kw]
    so conv+BN at output row h is  sum_kh  x_pad[(b, h+kh), :] @ slab[kh]  + bias_tiled.
    """
    Cout, Cin, _, _ = w.shape
    scale = gamma / jnp.sqrt(var + BN_EPS)
    wf = jnp.transpose(w, (2, 3, 1, 0)) * scale                   # [kh, kw, cin, cout]

    wpad = out_w + 2 * PAD
    sel = np.zeros((K, wpad, out_w), np.float32)                  # sel[kw, wo+kw, wo] = 1
    for kw in range(K):
        sel[kw, kw + np.arange(out_w), np.arange(out_w)] = 1.0
    slab = jnp.einsum("xqw,kxio->kqiwo", jnp.asarray(sel), wf)
    slab = slab.reshape(K, wpad * Cin, out_w * Cout).astype(jnp.bfloat16)

    bias = (b - mean) * scale + beta
    bias = jnp.tile(bias, (out_w,)).reshape(1, out_w * Cout).astype(jnp.float32)
    return slab, bias


def _pick_batch_block(n):
    # largest block <= 32 dividing N while keeping >= 2 grid steps (keeps both v7x TCs busy)
    for b in (32, 16, 8, 4, 2, 1):
        if n % b == 0 and n // b >= 2:
            return b
    return n


def conv_mnist_forward(x_nchw, params):
    N, Cin, H, W = x_nchw.shape
    assert Cin == 1 and H % 4 == 0 and W % 4 == 0
    C1 = params["layer1"][0].shape[0]
    C2 = params["layer2"][0].shape[0]
    Hp1, Wp1 = H // 2, W // 2
    Hp2, Wp2 = Hp1 // 2, Wp1 // 2

    w1, b1 = fold_bn_to_band(*params["layer1"], out_w=W)
    w2, b2 = fold_bn_to_band(*params["layer2"], out_w=Wp1)
    x_hw = x_nchw.reshape(N, H, W)             # drop size-1 channel: lane-dense row DMAs

    Bblk = _pick_batch_block(N)
    grid = (N // Bblk,)

    flops = 2 * N * K * (H * (W + 2 * PAD) * W * C1
                         + Hp1 * (Wp1 + 2 * PAD) * C1 * Wp1 * C2)
    bytes_accessed = (4 * x_hw.size + 2 * (w1.size + w2.size)
                      + 4 * (b1.size + b2.size) + 4 * N * Hp2 * Wp2 * C2)

    out = pl.pallas_call(
        make_fused_kernel(Bblk, H, W, C1, C2),
        out_shape=jax.ShapeDtypeStruct((N, Hp2, Wp2 * C2), jnp.float32),
        grid_spec=pltpu.PrefetchScalarGridSpec(
            num_scalar_prefetch=0,
            grid=grid,
            in_specs=[
                pl.BlockSpec((Bblk, H, W), lambda n: (n, 0, 0)),
                # grid-invariant operands (constant index_map -> fetched once, not per step)
                pl.BlockSpec(w1.shape, lambda n: (0, 0, 0)),
                pl.BlockSpec(b1.shape, lambda n: (0, 0)),
                pl.BlockSpec(w2.shape, lambda n: (0, 0, 0)),
                pl.BlockSpec(b2.shape, lambda n: (0, 0)),
            ],
            out_specs=pl.BlockSpec((Bblk, Hp2, Wp2 * C2), lambda n: (n, 0, 0)),
            scratch_shapes=[
                pltpu.VMEM((Bblk, H + 2 * PAD, W + 2 * PAD), jnp.float32),
                pltpu.VMEM((Bblk, Hp1 + 2 * PAD, (Wp1 + 2 * PAD) * C1), jnp.float32),
            ],
        ),
        compiler_params=pltpu.CompilerParams(dimension_semantics=("parallel",)),
        cost_estimate=pl.CostEstimate(flops=int(flops), transcendentals=0,
                                      bytes_accessed=int(bytes_accessed)),
    )(x_hw, w1, b1, w2, b2)

    # PyTorch's out.view(N, -1) flattens (C, H, W): tiny reorder of the [N, 4, 4, 32] result.
    out = out.reshape(N, Hp2, Wp2, C2).transpose(0, 3, 1, 2)
    return out.reshape(N, -1)


# ---------------- deterministic params & reference ----------------

def init_params(key):
    def conv_bn(k, cin, cout):
        k1, k2, k3, k4, k5, k6 = jax.random.split(k, 6)
        w = 0.1 * jax.random.normal(k1, (cout, cin, K, K), jnp.float32)
        b = 0.1 * jax.random.normal(k2, (cout,), jnp.float32)
        gamma = 1.0 + 0.1 * jax.random.normal(k3, (cout,), jnp.float32)
        beta = 0.1 * jax.random.normal(k4, (cout,), jnp.float32)
        mean = 0.1 * jax.random.normal(k5, (cout,), jnp.float32)
        var = jnp.abs(jax.random.normal(k6, (cout,), jnp.float32)) + 0.5
        return (w, b, gamma, beta, mean, var)

    k1, k2 = jax.random.split(key)
    return {"layer1": conv_bn(k1, 1, 16), "layer2": conv_bn(k2, 16, 32)}


def reference_forward(x_nchw, params):
    def layer(x, w, b, gamma, beta, mean, var):
        y = jax.lax.conv_general_dilated(
            x, w, window_strides=(1, 1), padding=[(PAD, PAD), (PAD, PAD)],
            dimension_numbers=("NCHW", "OIHW", "NCHW"))
        y = y + b[None, :, None, None]
        y = (y - mean[None, :, None, None]) / jnp.sqrt(var[None, :, None, None] + BN_EPS)
        y = y * gamma[None, :, None, None] + beta[None, :, None, None]
        y = jnp.maximum(y, 0.0)
        N, C, H, W = y.shape
        return y.reshape(N, C, H // 2, 2, W // 2, 2).max(axis=(3, 5))

    out = layer(x_nchw, *params["layer1"])
    out = layer(out, *params["layer2"])
    return out.reshape(out.shape[0], -1)


if __name__ == "__main__":
    key = jax.random.PRNGKey(0)
    kx, kp = jax.random.split(key)
    # batch=2, 1 input channel (per the module), spatial=16 (small MNIST-like)
    x = jax.random.normal(kx, (2, 1, 16, 16), jnp.float32)
    params = init_params(kp)

    fwd = jax.jit(conv_mnist_forward)
    out = jax.block_until_ready(fwd(x, params))
    assert out.shape == (2, 32 * 4 * 4), out.shape

    ref = reference_forward(x, params)
    err = float(jnp.abs(out - ref).max())
    # bf16 MXU operands (f32 accumulate): tolerance loosened vs the all-f32 version
    assert jnp.allclose(out, ref, atol=5e-2, rtol=5e-2), err

    print("KERNEL_OK")
</pallas_src>

<mosaic_0001>
module attributes {stable_mosaic.version = 11 : i64} {
  func.func @kernel(%arg0: i32, %arg1: memref<1x16x16xf32, #tpu.memory_space<vmem>>, %arg2: memref<5x20x256xbf16, #tpu.memory_space<vmem>>, %arg3: memref<1x256xf32, #tpu.memory_space<vmem>>, %arg4: memref<5x192x256xbf16, #tpu.memory_space<vmem>>, %arg5: memref<1x256xf32, #tpu.memory_space<vmem>>, %arg6: memref<1x4x128xf32, #tpu.memory_space<vmem>>, %arg7: memref<1x20x20xf32, #tpu.memory_space<vmem>>, %arg8: memref<1x12x192xf32, #tpu.memory_space<vmem>>) attributes {dimension_semantics = [#tpu.dimension_semantics<parallel>], iteration_bounds = array<i64: 2>, scalar_prefetch = 0 : i64, scratch_operands = 2 : i64, tpu.core_type = #tpu.core_type<tc>, window_params = [{transform_indices = @transform_0, window_bounds = array<i64: 1, 16, 16>}, {pipeline_mode = #tpu.pipeline_mode<synchronous>, transform_indices = @transform_1, window_bounds = array<i64: 5, 20, 256>}, {pipeline_mode = #tpu.pipeline_mode<synchronous>, transform_indices = @transform_2, window_bounds = array<i64: 1, 256>}, {pipeline_mode = #tpu.pipeline_mode<synchronous>, transform_indices = @transform_3, window_bounds = array<i64: 5, 192, 256>}, {pipeline_mode = #tpu.pipeline_mode<synchronous>, transform_indices = @transform_4, window_bounds = array<i64: 1, 256>}, {transform_indices = @transform_5, window_bounds = array<i64: 1, 4, 128>}]} {
    %cst = arith.constant 0.000000e+00 : f32
    %0 = vector.broadcast %cst : f32 to vector<1x20x20xf32>
    %c0 = arith.constant 0 : index
    %c0_0 = arith.constant 0 : index
    %c0_1 = arith.constant 0 : index
    %1 = vector.load %arg7[%c0, %c0_0, %c0_1] : memref<1x20x20xf32, #tpu.memory_space<vmem>>, vector<1x20x20xf32>
    tpu.vector_store %arg7[%c0, %c0_0, %c0_1], %0 {strides = array<i32>} : memref<1x20x20xf32, #tpu.memory_space<vmem>>, vector<1x20x20xf32>,
    %c0_2 = arith.constant 0 : index
    %c0_3 = arith.constant 0 : index
    %c0_4 = arith.constant 0 : index
    %2 = vector.load %arg1[%c0_2, %c0_3, %c0_4] : memref<1x16x16xf32, #tpu.memory_space<vmem>>, vector<1x16x16xf32>
    %c0_5 = arith.constant 0 : index
    %c2 = arith.constant 2 : index
    %c2_6 = arith.constant 2 : index
    %3 = vector.load %arg7[%c0_5, %c2, %c2_6] : memref<1x20x20xf32, #tpu.memory_space<vmem>>, vector<1x16x16xf32>
    tpu.vector_store %arg7[%c0_5, %c2, %c2_6], %2 {strides = array<i32>} : memref<1x20x20xf32, #tpu.memory_space<vmem>>, vector<1x16x16xf32>,
    %c0_7 = arith.constant 0 : index
    %c0_8 = arith.constant 0 : index
    %c0_9 = arith.constant 0 : index
    %4 = vector.load %arg7[%c0_7, %c0_8, %c0_9] : memref<1x20x20xf32, #tpu.memory_space<vmem>>, vector<1x20x20xf32>
    %5 = vector.extract_strided_slice %4 {offsets = [0, 0, 0], sizes = [1, 16, 20], strides = [1, 1, 1]} : vector<1x20x20xf32> to vector<1x16x20xf32>
    %6 = vector.shape_cast %5 : vector<1x16x20xf32> to vector<16x20xf32>
    %7 = arith.truncf %6 : vector<16x20xf32> to vector<16x20xbf16>
    %c0_10 = arith.constant 0 : index
    %c0_11 = arith.constant 0 : index
    %c0_12 = arith.constant 0 : index
    %8 = vector.load %arg2[%c0_10, %c0_11, %c0_12] : memref<5x20x256xbf16, #tpu.memory_space<vmem>>, vector<1x20x256xbf16>
    %9 = vector.shape_cast %8 : vector<1x20x256xbf16> to vector<20x256xbf16>
    %cst_13 = arith.constant dense<0.000000e+00> : vector<16x256xf32>
    %10 = tpu.matmul %7, %9, %cst_13 {dimension_numbers = #tpu.dot_dimension_numbers<[1], [0], [0], [1], [0, 0, 1, 1], [], []>} : vector<16x20xbf16>, vector<20x256xbf16>, vector<16x256xf32> -> vector<16x256xf32>
    %11 = vector.extract_strided_slice %4 {offsets = [0, 1, 0], sizes = [1, 16, 20], strides = [1, 1, 1]} : vector<1x20x20xf32> to vector<1x16x20xf32>
    %12 = vector.shape_cast %11 : vector<1x16x20xf32> to vector<16x20xf32>
    %13 = arith.truncf %12 : vector<16x20xf32> to vector<16x20xbf16>
    %c1 = arith.constant 1 : index
    %c0_14 = arith.constant 0 : index
    %c0_15 = arith.constant 0 : index
    %14 = vector.load %arg2[%c1, %c0_14, %c0_15] : memref<5x20x256xbf16, #tpu.memory_space<vmem>>, vector<1x20x256xbf16>
    %15 = vector.shape_cast %14 : vector<1x20x256xbf16> to vector<20x256xbf16>
    %cst_16 = arith.constant dense<0.000000e+00> : vector<16x256xf32>
    %16 = tpu.matmul %13, %15, %cst_16 {dimension_numbers = #tpu.dot_dimension_numbers<[1], [0], [0], [1], [0, 0, 1, 1], [], []>} : vector<16x20xbf16>, vector<20x256xbf16>, vector<16x256xf32> -> vector<16x256xf32>
    %17 = arith.addf %10, %16 : vector<16x256xf32>
    %18 = vector.extract_strided_slice %4 {offsets = [0, 2, 0], sizes = [1, 16, 20], strides = [1, 1, 1]} : vector<1x20x20xf32> to vector<1x16x20xf32>
    %19 = vector.shape_cast %18 : vector<1x16x20xf32> to vector<16x20xf32>
    %20 = arith.truncf %19 : vector<16x20xf32> to vector<16x20xbf16>
    %c2_17 = arith.constant 2 : index
    %c0_18 = arith.constant 0 : index
    %c0_19 = arith.constant 0 : index
    %21 = vector.load %arg2[%c2_17, %c0_18, %c0_19] : memref<5x20x256xbf16, #tpu.memory_space<vmem>>, vector<1x20x256xbf16>
    %22 = vector.shape_cast %21 : vector<1x20x256xbf16> to vector<20x256xbf16>
    %cst_20 = arith.constant dense<0.000000e+00> : vector<16x256xf32>
    %23 = tpu.matmul %20, %22, %cst_20 {dimension_numbers = #tpu.dot_dimension_numbers<[1], [0], [0], [1], [0, 0, 1, 1], [], []>} : vector<16x20xbf16>, vector<20x256xbf16>, vector<16x256xf32> -> vector<16x256xf32>
    %24 = arith.addf %17, %23 : vector<16x256xf32>
    %25 = vector.extract_strided_slice %4 {offsets = [0, 3, 0], sizes = [1, 16, 20], strides = [1, 1, 1]} : vector<1x20x20xf32> to vector<1x16x20xf32>
    %26 = vector.shape_cast %25 : vector<1x16x20xf32> to vector<16x20xf32>
    %27 = arith.truncf %26 : vector<16x20xf32> to vector<16x20xbf16>
    %c3 = arith.constant 3 : index
    %c0_21 = arith.constant 0 : index
    %c0_22 = arith.constant 0 : index
    %28 = vector.load %arg2[%c3, %c0_21, %c0_22] : memref<5x20x256xbf16, #tpu.memory_space<vmem>>, vector<1x20x256xbf16>
    %29 = vector.shape_cast %28 : vector<1x20x256xbf16> to vector<20x256xbf16>
    %cst_23 = arith.constant dense<0.000000e+00> : vector<16x256xf32>
    %30 = tpu.matmul %27, %29, %cst_23 {dimension_numbers = #tpu.dot_dimension_numbers<[1], [0], [0], [1], [0, 0, 1, 1], [], []>} : vector<16x20xbf16>, vector<20x256xbf16>, vector<16x256xf32> -> vector<16x256xf32>
    %31 = arith.addf %24, %30 : vector<16x256xf32>
    %32 = vector.extract_strided_slice %4 {offsets = [0, 4, 0], sizes = [1, 16, 20], strides = [1, 1, 1]} : vector<1x20x20xf32> to vector<1x16x20xf32>
    %33 = vector.shape_cast %32 : vector<1x16x20xf32> to vector<16x20xf32>
    %34 = arith.truncf %33 : vector<16x20xf32> to vector<16x20xbf16>
    %c4 = arith.constant 4 : index
    %c0_24 = arith.constant 0 : index
    %c0_25 = arith.constant 0 : index
    %35 = vector.load %arg2[%c4, %c0_24, %c0_25] : memref<5x20x256xbf16, #tpu.memory_space<vmem>>, vector<1x20x256xbf16>
    %36 = vector.shape_cast %35 : vector<1x20x256xbf16> to vector<20x256xbf16>
    %cst_26 = arith.constant dense<0.000000e+00> : vector<16x256xf32>
    %37 = tpu.matmul %34, %36, %cst_26 {dimension_numbers = #tpu.dot_dimension_numbers<[1], [0], [0], [1], [0, 0, 1, 1], [], []>} : vector<16x20xbf16>, vector<20x256xbf16>, vector<16x256xf32> -> vector<16x256xf32>
    %38 = arith.addf %31, %37 : vector<16x256xf32>
    %c0_27 = arith.constant 0 : index
    %c0_28 = arith.constant 0 : index
    %39 = vector.load %arg3[%c0_27, %c0_28] : memref<1x256xf32, #tpu.memory_space<vmem>>, vector<1x256xf32>
    %40 = vector.broadcast %39 : vector<1x256xf32> to vector<16x256xf32>
    %41 = arith.addf %38, %40 : vector<16x256xf32>
    %cst_29 = arith.constant 0.000000e+00 : f32
    %42 = vector.broadcast %cst_29 : f32 to vector<16x256xf32>
    %43 = arith.maximumf %41, %42 : vector<16x256xf32>
    %44 = vector.shape_cast %43 : vector<16x256xf32> to vector<1x8x512xf32>
    %45 = vector.extract_strided_slice %44 {offsets = [0, 0, 0], sizes = [1, 8, 256], strides = [1, 1, 1]} : vector<1x8x512xf32> to vector<1x8x256xf32>
    %46 = vector.extract_strided_slice %44 {offsets = [0, 0, 256], sizes = [1, 8, 256], strides = [1, 1, 1]} : vector<1x8x512xf32> to vector<1x8x256xf32>
    %47 = arith.maximumf %45, %46 : vector<1x8x256xf32>
    %48 = vector.shape_cast %47 : vector<1x8x256xf32> to vector<1x8x8x32xf32>
    %49 = vector.extract_strided_slice %48 {offsets = [0, 0, 0, 0], sizes = [1, 8, 8, 16], strides = [1, 1, 1, 1]} : vector<1x8x8x32xf32> to vector<1x8x8x16xf32>
    %50 = vector.extract_strided_slice %48 {offsets = [0, 0, 0, 16], sizes = [1, 8, 8, 16], strides = [1, 1, 1, 1]} : vector<1x8x8x32xf32> to vector<1x8x8x16xf32>
    %51 = arith.maximumf %49, %50 : vector<1x8x8x16xf32>
    %cst_30 = arith.constant 0.000000e+00 : f32
    %52 = vector.broadcast %cst_30 : f32 to vector<1x12x192xf32>
    %c0_31 = arith.constant 0 : index
    %c0_32 = arith.constant 0 : index
    %c0_33 = arith.constant 0 : index
    %53 = vector.load %arg8[%c0_31, %c0_32, %c0_33] : memref<1x12x192xf32, #tpu.memory_space<vmem>>, vector<1x12x192xf32>
    tpu.vector_store %arg8[%c0_31, %c0_32, %c0_33], %52 {strides = array<i32>} : memref<1x12x192xf32, #tpu.memory_space<vmem>>, vector<1x12x192xf32>,
    %54 = vector.shape_cast %51 : vector<1x8x8x16xf32> to vector<1x8x128xf32>
    %c0_34 = arith.constant 0 : index
    %c2_35 = arith.constant 2 : index
    %c32 = arith.constant 32 : index
    %55 = vector.load %arg8[%c0_34, %c2_35, %c32] : memref<1x12x192xf32, #tpu.memory_space<vmem>>, vector<1x8x128xf32>
    tpu.vector_store %arg8[%c0_34, %c2_35, %c32], %54 {strides = array<i32>} : memref<1x12x192xf32, #tpu.memory_space<vmem>>, vector<1x8x128xf32>,
    %c0_36 = arith.constant 0 : index
    %c0_37 = arith.constant 0 : index
    %c0_38 = arith.constant 0 : index
    %56 = vector.load %arg8[%c0_36, %c0_37, %c0_38] : memref<1x12x192xf32, #tpu.memory_space<vmem>>, vector<1x12x192xf32>
    %57 = vector.extract_strided_slice %56 {offsets = [0, 0, 0], sizes = [1, 8, 192], strides = [1, 1, 1]} : vector<1x12x192xf32> to vector<1x8x192xf32>
    %58 = vector.shape_cast %57 : vector<1x8x192xf32> to vector<8x192xf32>
    %59 = arith.truncf %58 : vector<8x192xf32> to vector<8x192xbf16>
    %c0_39 = arith.constant 0 : index
    %c0_40 = arith.constant 0 : index
    %c0_41 = arith.constant 0 : index
    %60 = vector.load %arg4[%c0_39, %c0_40, %c0_41] : memref<5x192x256xbf16, #tpu.memory_space<vmem>>, vector<1x192x256xbf16>
    %61 = vector.shape_cast %60 : vector<1x192x256xbf16> to vector<192x256xbf16>
    %cst_42 = arith.constant dense<0.000000e+00> : vector<8x256xf32>
    %62 = tpu.matmul %59, %61, %cst_42 {dimension_numbers = #tpu.dot_dimension_numbers<[1], [0], [0], [1], [0, 0, 1, 1], [], []>} : vector<8x192xbf16>, vector<192x256xbf16>, vector<8x256xf32> -> vector<8x256xf32>
    %63 = vector.extract_strided_slice %56 {offsets = [0, 1, 0], sizes = [1, 8, 192], strides = [1, 1, 1]} : vector<1x12x192xf32> to vector<1x8x192xf32>
    %64 = vector.shape_cast %63 : vector<1x8x192xf32> to vector<8x192xf32>
    %65 = arith.truncf %64 : vector<8x192xf32> to vector<8x192xbf16>
    %c1_43 = arith.constant 1 : index
    %c0_44 = arith.constant 0 : index
    %c0_45 = arith.constant 0 : index
    %66 = vector.load %arg4[%c1_43, %c0_44, %c0_45] : memref<5x192x256xbf16, #tpu.memory_space<vmem>>, vector<1x192x256xbf16>
    %67 = vector.shape_cast %66 : vector<1x192x256xbf16> to vector<192x256xbf16>
    %cst_46 = arith.constant dense<0.000000e+00> : vector<8x256xf32>
    %68 = tpu.matmul %65, %67, %cst_46 {dimension_numbers = #tpu.dot_dimension_numbers<[1], [0], [0], [1], [0, 0, 1, 1], [], []>} : vector<8x192xbf16>, vector<192x256xbf16>, vector<8x256xf32> -> vector<8x256xf32>
    %69 = arith.addf %62, %68 : vector<8x256xf32>
    %70 = vector.extract_strided_slice %56 {offsets = [0, 2, 0], sizes = [1, 8, 192], strides = [1, 1, 1]} : vector<1x12x192xf32> to vector<1x8x192xf32>
    %71 = vector.shape_cast %70 : vector<1x8x192xf32> to vector<8x192xf32>
    %72 = arith.truncf %71 : vector<8x192xf32> to vector<8x192xbf16>
    %c2_47 = arith.constant 2 : index
    %c0_48 = arith.constant 0 : index
    %c0_49 = arith.constant 0 : index
    %73 = vector.load %arg4[%c2_47, %c0_48, %c0_49] : memref<5x192x256xbf16, #tpu.memory_space<vmem>>, vector<1x192x256xbf16>
    %74 = vector.shape_cast %73 : vector<1x192x256xbf16> to vector<192x256xbf16>
    %cst_50 = arith.constant dense<0.000000e+00> : vector<8x256xf32>
    %75 = tpu.matmul %72, %74, %cst_50 {dimension_numbers = #tpu.dot_dimension_numbers<[1], [0], [0], [1], [0, 0, 1, 1], [], []>} : vector<8x192xbf16>, vector<192x256xbf16>, vector<8x256xf32> -> vector<8x256xf32>
    %76 = arith.addf %69, %75 : vector<8x256xf32>
    %77 = vector.extract_strided_slice %56 {offsets = [0, 3, 0], sizes = [1, 8, 192], strides = [1, 1, 1]} : vector<1x12x192xf32> to vector<1x8x192xf32>
    %78 = vector.shape_cast %77 : vector<1x8x192xf32> to vector<8x192xf32>
    %79 = arith.truncf %78 : vector<8x192xf32> to vector<8x192xbf16>
    %c3_51 = arith.constant 3 : index
    %c0_52 = arith.constant 0 : index
    %c0_53 = arith.constant 0 : index
    %80 = vector.load %arg4[%c3_51, %c0_52, %c0_53] : memref<5x192x256xbf16, #tpu.memory_space<vmem>>, vector<1x192x256xbf16>
    %81 = vector.shape_cast %80 : vector<1x192x256xbf16> to vector<192x256xbf16>
    %cst_54 = arith.constant dense<0.000000e+00> : vector<8x256xf32>
    %82 = tpu.matmul %79, %81, %cst_54 {dimension_numbers = #tpu.dot_dimension_numbers<[1], [0], [0], [1], [0, 0, 1, 1], [], []>} : vector<8x192xbf16>, vector<192x256xbf16>, vector<8x256xf32> -> vector<8x256xf32>
    %83 = arith.addf %76, %82 : vector<8x256xf32>
    %84 = vector.extract_strided_slice %56 {offsets = [0, 4, 0], sizes = [1, 8, 192], strides = [1, 1, 1]} : vector<1x12x192xf32> to vector<1x8x192xf32>
    %85 = vector.shape_cast %84 : vector<1x8x192xf32> to vector<8x192xf32>
    %86 = arith.truncf %85 : vector<8x192xf32> to vector<8x192xbf16>
    %c4_55 = arith.constant 4 : index
    %c0_56 = arith.constant 0 : index
    %c0_57 = arith.constant 0 : index
    %87 = vector.load %arg4[%c4_55, %c0_56, %c0_57] : memref<5x192x256xbf16, #tpu.memory_space<vmem>>, vector<1x192x256xbf16>
    %88 = vector.shape_cast %87 : vector<1x192x256xbf16> to vector<192x256xbf16>
    %cst_58 = arith.constant dense<0.000000e+00> : vector<8x256xf32>
    %89 = tpu.matmul %86, %88, %cst_58 {dimension_numbers = #tpu.dot_dimension_numbers<[1], [0], [0], [1], [0, 0, 1, 1], [], []>} : vector<8x192xbf16>, vector<192x256xbf16>, vector<8x256xf32> -> vector<8x256xf32>
    %90 = arith.addf %83, %89 : vector<8x256xf32>
    %c0_59 = arith.constant 0 : index
    %c0_60 = arith.constant 0 : index
    %91 = vector.load %arg5[%c0_59, %c0_60] : memref<1x256xf32, #tpu.memory_space<vmem>>, vector<1x256xf32>
    %92 = vector.broadcast %91 : vector<1x256xf32> to vector<8x256xf32>
    %93 = arith.addf %90, %92 : vector<8x256xf32>
    %cst_61 = arith.constant 0.000000e+00 : f32
    %94 = vector.broadcast %cst_61 : f32 to vector<8x256xf32>
    %95 = arith.maximumf %93, %94 : vector<8x256xf32>
    %96 = vector.shape_cast %95 : vector<8x256xf32> to vector<1x4x512xf32>
    %97 = vector.extract_strided_slice %96 {offsets = [0, 0, 0], sizes = [1, 4, 256], strides = [1, 1, 1]} : vector<1x4x512xf32> to vector<1x4x256xf32>
    %98 = vector.extract_strided_slice %96 {offsets = [0, 0, 256], sizes = [1, 4, 256], strides = [1, 1, 1]} : vector<1x4x512xf32> to vector<1x4x256xf32>
    %99 = arith.maximumf %97, %98 : vector<1x4x256xf32>
    %100 = vector.shape_cast %99 : vector<1x4x256xf32> to vector<1x4x4x64xf32>
    %101 = vector.extract_strided_slice %100 {offsets = [0, 0, 0, 0], sizes = [1, 4, 4, 32], strides = [1, 1, 1, 1]} : vector<1x4x4x64xf32> to vector<1x4x4x32xf32>
    %102 = vector.extract_strided_slice %100 {offsets = [0, 0, 0, 32], sizes = [1, 4, 4, 32], strides = [1, 1, 1, 1]} : vector<1x4x4x64xf32> to vector<1x4x4x32xf32>
    %103 = arith.maximumf %101, %102 : vector<1x4x4x32xf32>
    %104 = vector.shape_cast %103 : vector<1x4x4x32xf32> to vector<1x4x128xf32>
    %c0_62 = arith.constant 0 : index
    %c0_63 = arith.constant 0 : index
    %c0_64 = arith.constant 0 : index
    %105 = vector.load %arg6[%c0_62, %c0_63, %c0_64] : memref<1x4x128xf32, #tpu.memory_space<vmem>>, vector<1x4x128xf32>
    tpu.vector_store %arg6[%c0_62, %c0_63, %c0_64], %104 {strides = array<i32>} : memref<1x4x128xf32, #tpu.memory_space<vmem>>, vector<1x4x128xf32>,
    return
  }
  func.func @transform_0(%arg0: i32) -> (i32, i32, i32) {
    %c0_i32 = arith.constant 0 : i32
    %c0_i32_0 = arith.constant 0 : i32
    %c0_i32_1 = arith.constant 0 : i32
    return %arg0, %c0_i32, %c0_i32_0 : i32, i32, i32
  }
  func.func @transform_1(%arg0: i32) -> (i32, i32, i32) {
    %c0_i32 = arith.constant 0 : i32
    %c0_i32_0 = arith.constant 0 : i32
    %c0_i32_1 = arith.constant 0 : i32
    %c0_i32_2 = arith.constant 0 : i32
    return %c0_i32, %c0_i32_0, %c0_i32_1 : i32, i32, i32
  }
  func.func @transform_2(%arg0: i32) -> (i32, i32) {
    %c0_i32 = arith.constant 0 : i32
    %c0_i32_0 = arith.constant 0 : i32
    %c0_i32_1 = arith.constant 0 : i32
    return %c0_i32, %c0_i32_0 : i32, i32
  }
  func.func @transform_3(%arg0: i32) -> (i32, i32, i32) {
    %c0_i32 = arith.constant 0 : i32
    %c0_i32_0 = arith.constant 0 : i32
    %c0_i32_1 = arith.constant 0 : i32
    %c0_i32_2 = arith.constant 0 : i32
    return %c0_i32, %c0_i32_0, %c0_i32_1 : i32, i32, i32
  }
  func.func @transform_4(%arg0: i32) -> (i32, i32) {
    %c0_i32 = arith.constant 0 : i32
    %c0_i32_0 = arith.constant 0 : i32
    %c0_i32_1 = arith.constant 0 : i32
    return %c0_i32, %c0_i32_0 : i32, i32
  }
  func.func @transform_5(%arg0: i32) -> (i32, i32, i32) {
    %c0_i32 = arith.constant 0 : i32
    %c0_i32_0 = arith.constant 0 : i32
    %c0_i32_1 = arith.constant 0 : i32
    return %arg0, %c0_i32, %c0_i32_0 : i32, i32, i32
  }
}

</mosaic_0001>

<llo_original>
// kernel: tile.13
$region0: #{tile.13}
  #allocation0 [shape = 's32[1]{0}', space=sflag, size = 0x4, scoped, tag = 'scoped memory for tile.13']
  %s0 = inlined_call_operand.vmem [shape: f32[16], index: 0, kind: input, shape index: {}]
  %s1 = inlined_call_operand.vmem [shape: f32[16,16], index: 1, kind: output, shape index: {}]
  // Predicated region
  $region2: #{tile.13} parent=0 // pred_check
    _
  $region3: #{tile.13} parent=0 // pred_check_branch
    %3 = sbr.rel (0) target = $region5
  $region4: #{tile.13} parent=0 // pred_region
    _
  $region5: #{tile.13} parent=0 // pred_fallthru
    _
  %v4 = vld [vmem:[%s0] ss:$0 sm:$0xff]
  %5 = vst [vmem:[%s1] sm:$0xff] %v4
  %s6 = scalar_lea.vmem %s1, 8
  %7 = vst [vmem:[%s6] sm:$0xff] %v4

// kernel: tile.14
$region0: #{tile.14}
  %s0 = inlined_call_operand.vmem [shape: f32[16,16], index: 0, kind: input, shape index: {}]
  %s1 = inlined_call_operand.vmem [shape: f32[1,256], index: 1, kind: output, shape index: {}]
  $region1: #{tile.14} parent=0
    #allocation0 [shape = 'u8[8192]{0}', space=vmem, size = 0x2000, scoped, tag = 'scoped mem for output reshape']
    %s2 = smov 3
    %v3 = vld [vmem:[%s0] ss:$8 sm:%s2]
    %vm4 = vcmask 130048
    %5 = vst.msk [vmem:[#allocation0] ss:$8 sm:$0x3] %vm4, %v3
    %s6 = scalar_lea.vmem %s0, 7
    %s7 = smov 3
    %v8 = vld [vmem:[%s6] ss:$8 sm:%s7]
    %9 = vrot.lane.b32.xlu0 %v8, 112
    %v10 = vpop.permute.xlu0 %9
    %vm11 = vcmask 1048448
    %12 = vst.msk [vmem:[#allocation0] ss:$8 sm:$0x3] %vm11, %v10
    %s13 = scalar_lea.vmem %s0, 6
    %s14 = smov 3
    %v15 = vld [vmem:[%s13] ss:$8 sm:%s14]
    %16 = vrot.lane.b32.xlu0 %v15, 96
    %v17 = vpop.permute.xlu0 %16
    %vm18 = vcmask 917248
    %19 = vst.msk [vmem:[#allocation0] ss:$8 sm:$0x3] %vm18, %v17
    %s20 = scalar_lea.vmem %s0, 5
    %s21 = smov 3
    %v22 = vld [vmem:[%s20] ss:$8 sm:%s21]
    %23 = vrot.lane.b32.xlu0 %v22, 80
    %v24 = vpop.permute.xlu0 %23
    %vm25 = vcmask 786048
    %26 = vst.msk [vmem:[#allocation0] ss:$8 sm:$0x3] %vm25, %v24
    %s27 = scalar_lea.vmem %s0, 4
    %s28 = smov 3
    %v29 = vld [vmem:[%s27] ss:$8 sm:%s28]
    %30 = vrot.lane.b32.xlu0 %v29, 64
    %v31 = vpop.permute.xlu0 %30
    %vm32 = vcmask 654848
    %33 = vst.msk [vmem:[#allocation0] ss:$8 sm:$0x3] %vm32, %v31
    %s34 = scalar_lea.vmem %s0, 3
    %s35 = smov 3
    %v36 = vld [vmem:[%s34] ss:$8 sm:%s35]
    %37 = vrot.lane.b32.xlu0 %v36, 48
    %v38 = vpop.permute.xlu0 %37
    %vm39 = vcmask 523648
    %40 = vst.msk [vmem:[#allocation0] ss:$8 sm:$0x3] %vm39, %v38
    %s41 = scalar_lea.vmem %s0, 2
    %s42 = smov 3
    %v43 = vld [vmem:[%s41] ss:$8 sm:%s42]
    %44 = vrot.lane.b32.xlu0 %v43, 32
    %v45 = vpop.permute.xlu0 %44
    %vm46 = vcmask 392448
    %47 = vst.msk [vmem:[#allocation0] ss:$8 sm:$0x3] %vm46, %v45
    %s48 = scalar_lea.vmem %s0, 1
    %s49 = smov 3
    %v50 = vld [vmem:[%s48] ss:$8 sm:%s49]
    %51 = vrot.lane.b32.xlu0 %v50, 16
    %v52 = vpop.permute.xlu0 %51
    %vm53 = vcmask 261248
    %54 = vst.msk [vmem:[#allocation0] ss:$8 sm:$0x3] %vm53, %v52
    %s56 = ssub.s32 2, 1
    %v57 = vld [vmem:[#allocation0] sm:%s56]
    %s59 = ssub.s32 2, 1
    %60 = vst [vmem:[%s1] sm:%s59] %v57
    %s61 = scalar_lea.vmem [#allocation0], 8
    %v62 = vld [vmem:[%s61] sm:%s56]
    %s64 = ssub.s32 2, 1
    %s65 = scalar_lea.vmem %s1, 1
    %66 = vst [vmem:[%s65] sm:%s64] %v62

// kernel: tile.18
$region0: #{tile.18}
  #allocation0 [shape = 's32[1]{0}', space=sflag, size = 0x4, scoped, tag = 'scoped memory for tile.18']
  %s0 = inlined_call_operand.vmem [shape: f32[32], index: 0, kind: input, shape index: {}]
  %s1 = inlined_call_operand.vmem [shape: f32[8,32], index: 1, kind: output, shape index: {}]
  // Predicated region
  $region2: #{tile.18} parent=0 // pred_check
    _
  $region3: #{tile.18} parent=0 // pred_check_branch
    %3 = sbr.rel (0) target = $region5
  $region4: #{tile.18} parent=0 // pred_region
    _
  $region5: #{tile.18} parent=0 // pred_fallthru
    _
  %v4 = vld [vmem:[%s0] ss:$0 sm:$0xff]
  %5 = vst [vmem:[%s1] sm:$0xff] %v4

// kernel: tile.19
$region0: #{tile.19}
  %s0 = inlined_call_operand.vmem [shape: f32[8,32], index: 0, kind: input, shape index: {}]
  %s1 = inlined_call_operand.vmem [shape: f32[1,256], index: 1, kind: output, shape index: {}]
  $region1: #{tile.19} parent=0
    #allocation0 [shape = 'u8[8192]{0}', space=vmem, size = 0x2000, scoped, tag = 'scoped mem for output reshape']
    %s2 = smov 3
    %v3 = vld [vmem:[%s0] ss:$4 sm:%s2]
    %vm4 = vcmask 261120
    %5 = vst.msk [vmem:[#allocation0] ss:$8 sm:$0x3] %vm4, %v3
    %s6 = scalar_lea.vmem %s0, 3
    %s7 = smov 3
    %v8 = vld [vmem:[%s6] ss:$4 sm:%s7]
    %9 = vrot.lane.b32.xlu0 %v8, 96
    %v10 = vpop.permute.xlu0 %9
    %vm11 = vcmask 1048320
    %12 = vst.msk [vmem:[#allocation0] ss:$8 sm:$0x3] %vm11, %v10
    %s13 = scalar_lea.vmem %s0, 2
    %s14 = smov 3
    %v15 = vld [vmem:[%s13] ss:$4 sm:%s14]
    %16 = vrot.lane.b32.xlu0 %v15, 64
    %v17 = vpop.permute.xlu0 %16
    %vm18 = vcmask 785920
    %19 = vst.msk [vmem:[#allocation0] ss:$8 sm:$0x3] %vm18, %v17
    %s20 = scalar_lea.vmem %s0, 1
    %s21 = smov 3
    %v22 = vld [vmem:[%s20] ss:$4 sm:%s21]
    %23 = vrot.lane.b32.xlu0 %v22, 32
    %v24 = vpop.permute.xlu0 %23
    %vm25 = vcmask 523520
    %26 = vst.msk [vmem:[#allocation0] ss:$8 sm:$0x3] %vm25, %v24
    %s28 = ssub.s32 2, 1
    %v29 = vld [vmem:[#allocation0] sm:%s28]
    %s31 = ssub.s32 2, 1
    %32 = vst [vmem:[%s1] sm:%s31] %v29
    %s33 = scalar_lea.vmem [#allocation0], 8
    %v34 = vld [vmem:[%s33] sm:%s28]
    %s36 = ssub.s32 2, 1
    %s37 = scalar_lea.vmem %s1, 1
    %38 = vst [vmem:[%s37] sm:%s36] %v34

// kernel: conv_mnist_forward.1
$region0: #{conv_mnist_forward.1}
  #allocation0 [shape = 'u32[]', space=smem, size = 0x4, offset = 0x4, fixed_abs, tag = 'smem constant byte address 0x4 - core index']
  #allocation1 [shape = 'u32[72,128]{1,0:T(1,128)}', space=vmem, size = 0x9000, scoped, tag = 'internal scratch']
  #allocation2 [shape = 'f32[1,20,20]{2,1,0:T(8,128)}', space=vmem, size = 0x3000, scoped, tag = 'scratch operand']
  #allocation3 [shape = 'f32[1,12,192]{2,1,0:T(8,128)}', space=vmem, size = 0x4000, scoped, tag = 'scratch operand']
  %s0 = inlined_call_operand.vmem [shape: f32[2,16,16], index: 0, kind: input, shape index: {}]
  %s1 = inlined_call_operand.vmem [shape: bf16[5,20,256], index: 1, kind: input, shape index: {}]
  %s2 = inlined_call_operand.vmem [shape: f32[1,256], index: 2, kind: input, shape index: {}]
  %s3 = inlined_call_operand.vmem [shape: bf16[5,192,256], index: 3, kind: input, shape index: {}]
  %s4 = inlined_call_operand.vmem [shape: f32[1,256], index: 4, kind: input, shape index: {}]
  %s5 = inlined_call_operand.vmem [shape: f32[2,4,128], index: 5, kind: output, shape index: {}]
  %s6 = sld [smem:[#allocation0]]
  $region53: #{conv_mnist_forward.1} parent=0
    _
  %s8 = ssub.s32 1, %s6
  %s9 = scalar_select 0, %s8, %s6
  loop: start=0, step=1, limit=4
  $region2: #{conv_mnist_forward.1} parent=0 // loop_pre_header
    _
  $region3: #{conv_mnist_forward.1} parent=0 // loop_header
    %s11 = sphi 0, %s15
    %p12 = scmp.ge.s32.totalorder %s11, 4
    %s21 = sphi 0, %s23
    %s24 = sphi 0, %s21
    %s25 = sphi 0, %s24
    %s41 = sphi 0, %s25
    %s45 = sphi 0, %s45
    %s47 = sphi 0, %s45
    %s48 = sphi 0, %s47
    %s62 = sphi 0, %s48
    %s66 = sphi 0, %s66
    %s68 = sphi 0, %s66
    %s69 = sphi 0, %s68
    %s83 = sphi 0, %s69
    %s87 = sphi 0, %s87
    %s89 = sphi 0, %s87
    %s90 = sphi 0, %s89
    %s104 = sphi 0, %s90
    %s108 = sphi 0, %s108
    %s110 = sphi 0, %s108
    %s111 = sphi 0, %s110
    %s125 = sphi 0, %s111
    %s131 = sphi 0, %s133
    %s134 = sphi 0, %s131
    %s135 = sphi 0, %s134
    %s151 = sphi 0, %s135
  $region4: #{conv_mnist_forward.1} parent=0 // loop_header_branch
    %14 = sbr.rel (%p12) target = $region8
  $region5: #{conv_mnist_forward.1} parent=0 // loop_body
    %s16 = ssub.s32 %s11, 1
    %s17 = ssub.s32 %s11, 2
    %s18 = sadd.s32 %s11, 1
    %s19 = ssub.s32 %s11, %s18
    %p20 = scmp.eq.s32.totalorder %s19, 0
    %s22 = sadd.s32 %s21, 1
    %s23 = scalar_select %p20, %s21, %s22
    %p26 = pneg %p20
    %p27 = scmp.eq.s32.totalorder %s11, 1
    %p28 = por %p26, %p27
    %p29 = scmp.ne.s32.totalorder %s21, %s24
    %p30 = scmp.eq.s32.totalorder %s11, 0
    %p31 = por %p29, %p30
    %p32 = scmp.ne.s32.totalorder %s21, %s24
    %p33 = scmp.eq.s32.totalorder %s16, 1
    %p34 = por %p32, %p33
    %p35 = scmp.ne.s32.totalorder %s24, %s25
    %p36 = scmp.eq.s32.totalorder %s16, 0
    %p37 = por %p35, %p36
    %p38 = scmp.ne.s32.totalorder %s24, %s25
    %p39 = scmp.eq.s32.totalorder %s17, 1
    %p40 = por %p38, %p39
    %p42 = scmp.ne.s32.totalorder %s25, %s41
    %p43 = scmp.eq.s32.totalorder %s17, 0
    %p44 = por %p42, %p43
    %s46 = sadd.s32 %s45, 1
    %p49 = scmp.eq.s32.totalorder %s11, 1
    %p50 = scmp.ne.s32.totalorder %s45, %s47
    %p51 = scmp.eq.s32.totalorder %s11, 0
    %p52 = por %p50, %p51
    %p53 = scmp.ne.s32.totalorder %s45, %s47
    %p54 = scmp.eq.s32.totalorder %s16, 1
    %p55 = por %p53, %p54
    %p56 = scmp.ne.s32.totalorder %s47, %s48
    %p57 = scmp.eq.s32.totalorder %s16, 0
    %p58 = por %p56, %p57
    %p59 = scmp.ne.s32.totalorder %s47, %s48
    %p60 = scmp.eq.s32.totalorder %s17, 1
    %p61 = por %p59, %p60
    %p63 = scmp.ne.s32.totalorder %s48, %s62
    %p64 = scmp.eq.s32.totalorder %s17, 0
    %p65 = por %p63, %p64
    %s67 = sadd.s32 %s66, 1
    %p70 = scmp.eq.s32.totalorder %s11, 1
    %p71 = scmp.ne.s32.totalorder %s66, %s68
    %p72 = scmp.eq.s32.totalorder %s11, 0
    %p73 = por %p71, %p72
    %p74 = scmp.ne.s32.totalorder %s66, %s68
    %p75 = scmp.eq.s32.totalorder %s16, 1
    %p76 = por %p74, %p75
    %p77 = scmp.ne.s32.totalorder %s68, %s69
    %p78 = scmp.eq.s32.totalorder %s16, 0
    %p79 = por %p77, %p78
    %p80 = scmp.ne.s32.totalorder %s68, %s69
    %p81 = scmp.eq.s32.totalorder %s17, 1
    %p82 = por %p80, %p81
    %p84 = scmp.ne.s32.totalorder %s69, %s83
    %p85 = scmp.eq.s32.totalorder %s17, 0
    %p86 = por %p84, %p85
    %s88 = sadd.s32 %s87, 1
    %p91 = scmp.eq.s32.totalorder %s11, 1
    %p92 = scmp.ne.s32.totalorder %s87, %s89
    %p93 = scmp.eq.s32.totalorder %s11, 0
    %p94 = por %p92, %p93
    %p95 = scmp.ne.s32.totalorder %s87, %s89
    %p96 = scmp.eq.s32.totalorder %s16, 1
    %p97 = por %p95, %p96
    %p98 = scmp.ne.s32.totalorder %s89, %s90
    %p99 = scmp.eq.s32.totalorder %s16, 0
    %p100 = por %p98, %p99
    %p101 = scmp.ne.s32.totalorder %s89, %s90
    %p102 = scmp.eq.s32.totalorder %s17, 1
    %p103 = por %p101, %p102
    %p105 = scmp.ne.s32.totalorder %s90, %s104
    %p106 = scmp.eq.s32.totalorder %s17, 0
    %p107 = por %p105, %p106
    %s109 = sadd.s32 %s108, 1
    %p112 = scmp.eq.s32.totalorder %s11, 1
    %p113 = scmp.ne.s32.totalorder %s108, %s110
    %p114 = scmp.eq.s32.totalorder %s11, 0
    %p115 = por %p113, %p114
    %p116 = scmp.ne.s32.totalorder %s108, %s110
    %p117 = scmp.eq.s32.totalorder %s16, 1
    %p118 = por %p116, %p117
    %p119 = scmp.ne.s32.totalorder %s110, %s111
    %p120 = scmp.eq.s32.totalorder %s16, 0
    %p121 = por %p119, %p120
    %p122 = scmp.ne.s32.totalorder %s110, %s111
    %p123 = scmp.eq.s32.totalorder %s17, 1
    %p124 = por %p122, %p123
    %p126 = scmp.ne.s32.totalorder %s111, %s125
    %p127 = scmp.eq.s32.totalorder %s17, 0
    %p128 = por %p126, %p127
    %s129 = ssub.s32 %s11, %s18
    %p130 = scmp.eq.s32.totalorder %s129, 0
    %s132 = sadd.s32 %s131, 1
    %s133 = scalar_select %p130, %s131, %s132
    %p136 = pneg %p130
    %p137 = scmp.eq.s32.totalorder %s11, 1
    %p138 = por %p136, %p137
    %p139 = scmp.ne.s32.totalorder %s131, %s134
    %p140 = scmp.eq.s32.totalorder %s11, 0
    %p141 = por %p139, %p140
    %p142 = scmp.ne.s32.totalorder %s131, %s134
    %p143 = scmp.eq.s32.totalorder %s16, 1
    %p144 = por %p142, %p143
    %p145 = scmp.ne.s32.totalorder %s134, %s135
    %p146 = scmp.eq.s32.totalorder %s16, 0
    %p147 = por %p145, %p146
    %p148 = scmp.ne.s32.totalorder %s134, %s135
    %p149 = scmp.eq.s32.totalorder %s17, 1
    %p150 = por %p148, %p149
    %p152 = scmp.ne.s32.totalorder %s135, %s151
    %p153 = scmp.eq.s32.totalorder %s17, 0
    %p154 = por %p152, %p153
    %p155 = scmp.le.s32.totalorder 1, %s11
    %p156 = scmp.lt.s32.totalorder %s11, 3
    %p157 = pnand %p155, %p156
    %p158 = pneg %p157
    // Predicated region
    $region9: #{conv_mnist_forward.1} parent=5 // pred_check
      _
    $region10: #{conv_mnist_forward.1} parent=5 // pred_check_branch
      %160 = sbr.rel (%p157) target = $region12
    $region11: #{conv_mnist_forward.1} parent=5 // pred_region
      %s161 = ssub.s32 %s11, 1
      // Predicated region
      $region13: #{conv_mnist_forward.1} parent=11 // pred_check
        %p162 = pneg %p58
      $region14: #{conv_mnist_forward.1} parent=11 // pred_check_branch
        %164 = sbr.rel (%p162) target = $region16
      $region15: #{conv_mnist_forward.1} parent=11 // pred_region
        _
      $region16: #{conv_mnist_forward.1} parent=11 // pred_fallthru
        _
      // Predicated region
      $region17: #{conv_mnist_forward.1} parent=11 // pred_check
        %p165 = pneg %p79
      $region18: #{conv_mnist_forward.1} parent=11 // pred_check_branch
        %167 = sbr.rel (%p165) target = $region20
      $region19: #{conv_mnist_forward.1} parent=11 // pred_region
        _
      $region20: #{conv_mnist_forward.1} parent=11 // pred_fallthru
        _
      // Predicated region
      $region21: #{conv_mnist_forward.1} parent=11 // pred_check
        %p168 = pneg %p100
      $region22: #{conv_mnist_forward.1} parent=11 // pred_check_branch
        %170 = sbr.rel (%p168) target = $region24
      $region23: #{conv_mnist_forward.1} parent=11 // pred_region
        _
      $region24: #{conv_mnist_forward.1} parent=11 // pred_fallthru
        _
      // Predicated region
      $region25: #{conv_mnist_forward.1} parent=11 // pred_check
        %p171 = pneg %p121
      $region26: #{conv_mnist_forward.1} parent=11 // pred_check_branch
        %173 = sbr.rel (%p171) target = $region28
      $region27: #{conv_mnist_forward.1} parent=11 // pred_region
        _
      $region28: #{conv_mnist_forward.1} parent=11 // pred_fallthru
        _
    $region12: #{conv_mnist_forward.1} parent=5 // pred_fallthru
      _
    %p174 = scmp.lt.s32.totalorder %s11, 2
    // Predicated region
    $region29: #{conv_mnist_forward.1} parent=5 // pred_check
      %p175 = pneg %p174
    $region30: #{conv_mnist_forward.1} parent=5 // pred_check_branch
      %177 = sbr.rel (%p175) target = $region32
    $region31: #{conv_mnist_forward.1} parent=5 // pred_region
      // Predicated region
      $region33: #{conv_mnist_forward.1} parent=31 // pred_check
        %p178 = pneg %p31
      $region34: #{conv_mnist_forward.1} parent=31 // pred_check_branch
        %180 = sbr.rel (%p178) target = $region36
      $region35: #{conv_mnist_forward.1} parent=31 // pred_region
        %p181 = scmp.lt.s32.totalorder %s11, 1
        %s182 = scalar_select %p181, %s11, 1
        %s183 = smul.addr %s182, 2
        %s184 = smul.addr %s183, 8
        %s185 = scalar_lea.vmem %s0, %s184
      $region36: #{conv_mnist_forward.1} parent=31 // pred_fallthru
        _
    $region32: #{conv_mnist_forward.1} parent=5 // pred_fallthru
      _
    %p186 = scmp.le.s32.totalorder 1, %s11
    %p187 = scmp.lt.s32.totalorder %s11, 3
    %p188 = pnand %p186, %p187
    %p189 = pneg %p188
    // Predicated region
    $region37: #{conv_mnist_forward.1} parent=5 // pred_check
      _
    $region38: #{conv_mnist_forward.1} parent=5 // pred_check_branch
      %191 = sbr.rel (%p188) target = $region40
    $region39: #{conv_mnist_forward.1} parent=5 // pred_region
      %s192 = ssub.s32 %s11, 1
      %p193 = scmp.lt.s32.totalorder %s16, 1
      %s194 = scalar_select %p193, %s16, 1
      %s195 = smul.addr %s194, 2
      %s196 = smul.addr %s195, 8
      %s197 = scalar_lea.vmem %s0, %s196
      %p198 = pneg %p37
      %p199 = pneg %p34
      %p200 = pneg %p58
      %p201 = pneg %p55
      %p202 = pneg %p79
      %p203 = pneg %p76
      %p204 = pneg %p100
      %p205 = pneg %p97
      %p206 = pneg %p121
      %p207 = pneg %p118
      %p208 = pneg %p147
      %p209 = pneg %p144
      %p210 = scmp.lt.s32.totalorder %s16, 1
      %s211 = scalar_select %p210, %s16, 1
      %s212 = smul.addr %s211, 4
      %s213 = scalar_lea.vmem %s5, %s212
      %p214 = scmp.lt.s32.totalorder %s16, 1
      %s215 = scalar_select %p214, %s16, 1
      %s216 = smul.addr %s215, 2
      %s217 = smul.addr %s216, 8
      %s218 = scalar_lea.vmem %s0, %s217
      %p219 = scmp.lt.s32.totalorder %s16, 1
      %s220 = scalar_select %p219, %s16, 1
      %s221 = smul.addr %s220, 4
      %s222 = scalar_lea.vmem %s5, %s221
      %vm224 = vcmask 162816
      %225 = vst.msk [vmem:[#allocation2] sm:$0xff] %vm224, 0.0
      %226 = vst.msk [vmem:[#allocation2 + $0x8] sm:$0xff] %vm224, 0.0
      %vm227 = vcmask 158720
      %228 = vst.msk [vmem:[#allocation2 + $0x10] sm:$0xf] %vm227, 0.0
      %v229 = vld [vmem:[%s218] sm:$0xff]
      %v230 = vld [vmem:[%s218 + $0x8] sm:$0xff]
      %233 = vrot.lane.b32.xlu0 %v229, 2
      %v234 = vpop.permute.xlu0 %233
      %235 = vrot.lane.b32.xlu0 %v230, 2
      %v236 = vpop.permute.xlu0 %235
      %vm239 = vcmask 146448
      %240 = vst.msk [vmem:[#allocation2 + $0x2] sm:$0xff] %vm239, %v234
      %241 = vst.msk [vmem:[#allocation2 + $0xa] sm:$0xff] %vm239, %v236
      %v242 = vld [vmem:[#allocation2] sm:$0xff]
      %v243 = vld [vmem:[#allocation2 + $0x8] sm:$0xff]
      %v244 = vld [vmem:[#allocation2 + $0x10] sm:$0xf]
      %v245 = vpack.c.bf16 %v243, %v242
      %v246 = vld [vmem:[%s1] sm:$0xff]
      %v247 = vld [vmem:[%s1 + $0x8] sm:$0xff]
      %v248 = vld [vmem:[%s1 + $0x10] sm:$0x33]
      %v249 = vpack.c.bf16 %v244, %v244
      %s250 = scalar_lea.vmem %s1, 24
      %v251 = vld [vmem:[%s250] sm:$0xff]
      %v252 = vld [vmem:[%s250 + $0x8] sm:$0xff]
      %v253 = vld [vmem:[%s250 + $0x10] sm:$0x33]
      %vm254 = vsmask.f32 7424
      %v256 = vshrl.u32 %v245, 16
      %v258 = vshll.u32 %v245, 16
      %v260 = vrot.slane %v258, 1
      %v261 = vor.u32 %v256, %v260
      %v263 = vshll.u32 %v249, 16
      %v265 = vrot.slane %v263, 1
      %v266 = vsel %vm254, %v261, %v265
      %v270 = vunpack.c.l.b16 %v251
      %v271 = vunpack.c.h.b16 %v251
      %v272 = vunpack.c.l.b16 %v252
      %v273 = vunpack.c.h.b16 %v252
      %v274 = vunpack.c.l.b16 %v253
      %v275 = vunpack.c.h.b16 %v253
      %v276 = vpack.c.b16 %v272, %v270
      %v277 = vpack.c.b16 %v273, %v271
      %v278 = vpack.c.b16 %v274, %v274
      %v279 = vpack.c.b16 %v275, %v275
      %v283 = vsel %vm224, %v266, 0
      %vm285 = vcmask 1041408
      %v287 = vsel %vm285, %v278, 0
      %v290 = vsel %vm285, %v279, 0
      %292 = vmatpush.bf16.msra.mxu0 0
      %293 = vmatpush.bf16.msra.mxu0 0
      %294 = vmatpush.bf16.msra.mxu0 0
      %295 = vmatpush.bf16.msra.mxu0 0
      %296 = vmatpush.bf16.msra.mxu0 0
      %297 = vmatpush.bf16.msra.mxu0 0
      %298 = vmatpush.bf16.msra.mxu0 %v287
      %299 = vmatpush.bf16.msra.mxu0 %v276
      %300 = vmatmul.bf16.gmra.mxu0 %v283
      %v301 = vpop.f32.mrf.mxu0
      %v302 = vadd.f32 0.0, %v301
      %v303 = vpop.f32.mrf.mxu0
      %v304 = vadd.f32 0.0, %v303
      %305 = vdwg.mxu0
      %306 = vmatpush.bf16.msra.mxu0 0
      %307 = vmatpush.bf16.msra.mxu0 0
      %308 = vmatpush.bf16.msra.mxu0 0
      %309 = vmatpush.bf16.msra.mxu0 0
      %310 = vmatpush.bf16.msra.mxu0 0
      %311 = vmatpush.bf16.msra.mxu0 0
      %312 = vmatpush.bf16.msra.mxu0 %v290
      %313 = vmatpush.bf16.msra.mxu0 %v277
      %314 = vmatmul.bf16.gmra.mxu0 %v283
      %v315 = vpop.f32.mrf.mxu0
      %v316 = vadd.f32 0.0, %v315
      %v317 = vpop.f32.mrf.mxu0
      %v318 = vadd.f32 0.0, %v317
      %319 = vdwg.mxu0
      %v323 = vunpack.c.l.b16 %v246
      %v324 = vunpack.c.h.b16 %v246
      %v325 = vunpack.c.l.b16 %v247
      %v326 = vunpack.c.h.b16 %v247
      %v327 = vunpack.c.l.b16 %v248
      %v328 = vunpack.c.h.b16 %v248
      %v329 = vpack.c.b16 %v325, %v323
      %v330 = vpack.c.b16 %v326, %v324
      %v331 = vpack.c.b16 %v327, %v327
      %v332 = vpack.c.b16 %v328, %v328
      %v335 = vsel %vm224, %v245, 0
      %v338 = vsel %vm285, %v331, 0
      %v341 = vsel %vm285, %v332, 0
      %343 = vmatpush.bf16.msra.mxu0 0
      %344 = vmatpush.bf16.msra.mxu0 0
      %345 = vmatpush.bf16.msra.mxu0 0
      %346 = vmatpush.bf16.msra.mxu0 0
      %347 = vmatpush.bf16.msra.mxu0 0
      %348 = vmatpush.bf16.msra.mxu0 0
      %349 = vmatpush.bf16.msra.mxu0 %v338
      %350 = vmatpush.bf16.msra.mxu0 %v329
      %351 = vmatmul.bf16.gmra.mxu0 %v335
      %v352 = vpop.f32.mrf.mxu0
      %v353 = vadd.f32 %v302, %v352
      %v354 = vpop.f32.mrf.mxu0
      %v355 = vadd.f32 %v304, %v354
      %356 = vdwg.mxu0
      %357 = vmatpush.bf16.msra.mxu0 0
      %358 = vmatpush.bf16.msra.mxu0 0
      %359 = vmatpush.bf16.msra.mxu0 0
      %360 = vmatpush.bf16.msra.mxu0 0
      %361 = vmatpush.bf16.msra.mxu0 0
      %362 = vmatpush.bf16.msra.mxu0 0
      %363 = vmatpush.bf16.msra.mxu0 %v341
      %364 = vmatpush.bf16.msra.mxu0 %v330
      %365 = vmatmul.bf16.gmra.mxu0 %v335
      %v366 = vpop.f32.mrf.mxu0
      %v367 = vadd.f32 %v316, %v366
      %v368 = vpop.f32.mrf.mxu0
      %v369 = vadd.f32 %v318, %v368
      %370 = vdwg.mxu0
      %s371 = scalar_lea.vmem %s1, 48
      %v372 = vld [vmem:[%s371] sm:$0xff]
      %v373 = vld [vmem:[%s371 + $0x8] sm:$0xff]
      %v374 = vld [vmem:[%s371 + $0x10] sm:$0x33]
      %vm377 = vcmask 1046528
      %v378 = vrot.slane %v245, 1
      %v379 = vrot.slane %v249, 1
      %v380 = vsel %vm377, %v378, %v379
      %v384 = vunpack.c.l.b16 %v372
      %v385 = vunpack.c.h.b16 %v372
      %v386 = vunpack.c.l.b16 %v373
      %v387 = vunpack.c.h.b16 %v373
      %v388 = vunpack.c.l.b16 %v374
      %v389 = vunpack.c.h.b16 %v374
      %v390 = vpack.c.b16 %v386, %v384
      %v391 = vpack.c.b16 %v387, %v385
      %v392 = vpack.c.b16 %v388, %v388
      %v393 = vpack.c.b16 %v389, %v389
      %v397 = vsel %vm224, %v380, 0
      %v400 = vsel %vm285, %v392, 0
      %v403 = vsel %vm285, %v393, 0
      %405 = vmatpush.bf16.msra.mxu0 0
      %406 = vmatpush.bf16.msra.mxu0 0
      %407 = vmatpush.bf16.msra.mxu0 0
      %408 = vmatpush.bf16.msra.mxu0 0
      %409 = vmatpush.bf16.msra.mxu0 0
      %410 = vmatpush.bf16.msra.mxu0 0
      %411 = vmatpush.bf16.msra.mxu0 %v400
      %412 = vmatpush.bf16.msra.mxu0 %v390
      %413 = vmatmul.bf16.gmra.mxu0 %v397
      %v414 = vpop.f32.mrf.mxu0
      %v415 = vadd.f32 0.0, %v414
      %v416 = vpop.f32.mrf.mxu0
      %v417 = vadd.f32 0.0, %v416
      %418 = vdwg.mxu0
      %419 = vmatpush.bf16.msra.mxu0 0
      %420 = vmatpush.bf16.msra.mxu0 0
      %421 = vmatpush.bf16.msra.mxu0 0
      %422 = vmatpush.bf16.msra.mxu0 0
      %423 = vmatpush.bf16.msra.mxu0 0
      %424 = vmatpush.bf16.msra.mxu0 0
      %425 = vmatpush.bf16.msra.mxu0 %v403
      %426 = vmatpush.bf16.msra.mxu0 %v391
      %427 = vmatmul.bf16.gmra.mxu0 %v397
      %v428 = vpop.f32.mrf.mxu0
      %v429 = vadd.f32 0.0, %v428
      %v430 = vpop.f32.mrf.mxu0
      %v431 = vadd.f32 0.0, %v430
      %432 = vdwg.mxu0
      %v433 = vadd.f32 %v353, %v415
      %v434 = vadd.f32 %v367, %v429
      %v435 = vadd.f32 %v355, %v417
      %v436 = vadd.f32 %v369, %v431
      %s437 = scalar_lea.vmem %s1, 72
      %v438 = vld [vmem:[%s437] sm:$0xff]
      %v439 = vld [vmem:[%s437 + $0x8] sm:$0xff]
      %v440 = vld [vmem:[%s437 + $0x10] sm:$0x33]
      %vm441 = vsmask.f32 6400
      %v442 = vrot.slane %v256, 1
      %v443 = vrot.slane %v258, 2
      %v444 = vor.u32 %v442, %v443
      %v445 = vshrl.u32 %v249, 16
      %v447 = vrot.slane %v445, 1
      %v448 = vrot.slane %v263, 2
      %v449 = vor.u32 %v447, %v448
      %v450 = vsel %vm441, %v444, %v449
      %v454 = vunpack.c.l.b16 %v438
      %v455 = vunpack.c.h.b16 %v438
      %v456 = vunpack.c.l.b16 %v439
      %v457 = vunpack.c.h.b16 %v439
      %v458 = vunpack.c.l.b16 %v440
      %v459 = vunpack.c.h.b16 %v440
      %v460 = vpack.c.b16 %v456, %v454
      %v461 = vpack.c.b16 %v457, %v455
      %v462 = vpack.c.b16 %v458, %v458
      %v463 = vpack.c.b16 %v459, %v459
      %v467 = vsel %vm224, %v450, 0
      %v470 = vsel %vm285, %v462, 0
      %v473 = vsel %vm285, %v463, 0
      %475 = vmatpush.bf16.msra.mxu0 0
      %476 = vmatpush.bf16.msra.mxu0 0
      %477 = vmatpush.bf16.msra.mxu0 0
      %478 = vmatpush.bf16.msra.mxu0 0
      %479 = vmatpush.bf16.msra.mxu0 0
      %480 = vmatpush.bf16.msra.mxu0 0
      %481 = vmatpush.bf16.msra.mxu0 %v470
      %482 = vmatpush.bf16.msra.mxu0 %v460
      %483 = vmatmul.bf16.gmra.mxu0 %v467
      %v484 = vpop.f32.mrf.mxu0
      %v485 = vadd.f32 0.0, %v484
      %v486 = vpop.f32.mrf.mxu0
      %v487 = vadd.f32 0.0, %v486
      %488 = vdwg.mxu0
      %489 = vmatpush.bf16.msra.mxu0 0
      %490 = vmatpush.bf16.msra.mxu0 0
      %491 = vmatpush.bf16.msra.mxu0 0
      %492 = vmatpush.bf16.msra.mxu0 0
      %493 = vmatpush.bf16.msra.mxu0 0
      %494 = vmatpush.bf16.msra.mxu0 0
      %495 = vmatpush.bf16.msra.mxu0 %v473
      %496 = vmatpush.bf16.msra.mxu0 %v461
      %497 = vmatmul.bf16.gmra.mxu0 %v467
      %v498 = vpop.f32.mrf.mxu0
      %v499 = vadd.f32 0.0, %v498
      %v500 = vpop.f32.mrf.mxu0
      %v501 = vadd.f32 0.0, %v500
      %502 = vdwg.mxu0
      %v503 = vadd.f32 %v433, %v485
      %v504 = vadd.f32 %v434, %v499
      %v505 = vadd.f32 %v435, %v487
      %v506 = vadd.f32 %v436, %v501
      %s507 = scalar_lea.vmem %s1, 96
      %v508 = vld [vmem:[%s507] sm:$0xff]
      %v509 = vld [vmem:[%s507 + $0x8] sm:$0xff]
      %v510 = vld [vmem:[%s507 + $0x10] sm:$0x33]
      %vm511 = vcmask 1045504
      %v512 = vrot.slane %v245, 2
      %v513 = vrot.slane %v249, 2
      %v514 = vsel %vm511, %v512, %v513
      %v518 = vunpack.c.l.b16 %v508
      %v519 = vunpack.c.h.b16 %v508
      %v520 = vunpack.c.l.b16 %v509
      %v521 = vunpack.c.h.b16 %v509
      %v522 = vunpack.c.l.b16 %v510
      %v523 = vunpack.c.h.b16 %v510
      %v524 = vpack.c.b16 %v520, %v518
      %v525 = vpack.c.b16 %v521, %v519
      %v526 = vpack.c.b16 %v522, %v522
      %v527 = vpack.c.b16 %v523, %v523
      %v531 = vsel %vm224, %v514, 0
      %v534 = vsel %vm285, %v526, 0
      %v537 = vsel %vm285, %v527, 0
      %539 = vmatpush.bf16.msra.mxu0 0
      %540 = vmatpush.bf16.msra.mxu0 0
      %541 = vmatpush.bf16.msra.mxu0 0
      %542 = vmatpush.bf16.msra.mxu0 0
      %543 = vmatpush.bf16.msra.mxu0 0
      %544 = vmatpush.bf16.msra.mxu0 0
      %545 = vmatpush.bf16.msra.mxu0 %v534
      %546 = vmatpush.bf16.msra.mxu0 %v524
      %547 = vmatmul.bf16.gmra.mxu0 %v531
      %v548 = vpop.f32.mrf.mxu0
      %v549 = vadd.f32 0.0, %v548
      %v550 = vpop.f32.mrf.mxu0
      %v551 = vadd.f32 0.0, %v550
      %552 = vdwg.mxu0
      %553 = vmatpush.bf16.msra.mxu0 0
      %554 = vmatpush.bf16.msra.mxu0 0
      %555 = vmatpush.bf16.msra.mxu0 0
      %556 = vmatpush.bf16.msra.mxu0 0
      %557 = vmatpush.bf16.msra.mxu0 0
      %558 = vmatpush.bf16.msra.mxu0 0
      %559 = vmatpush.bf16.msra.mxu0 %v537
      %560 = vmatpush.bf16.msra.mxu0 %v525
      %561 = vmatmul.bf16.gmra.mxu0 %v531
      %v562 = vpop.f32.mrf.mxu0
      %v563 = vadd.f32 0.0, %v562
      %v564 = vpop.f32.mrf.mxu0
      %v565 = vadd.f32 0.0, %v564
      %566 = vdwg.mxu0
      %v567 = vadd.f32 %v503, %v549
      %v568 = vadd.f32 %v504, %v563
      %v569 = vadd.f32 %v505, %v551
      %v570 = vadd.f32 %v506, %v565
      %v571 = vld [vmem:[%s2] sm:$0x3]
      %v573 = vperm.slane %v571, 0
      %v574 = vperm.slane %v571, 1
      %v577 = vadd.f32 %v567, %v573
      %v578 = vadd.f32 %v568, %v574
      %v579 = vadd.f32 %v569, %v573
      %v580 = vadd.f32 %v570, %v574
      %v581 = vmax.f32 %v577, 0.0
      %v582 = vmax.f32 %v578, 0.0
      %v583 = vmax.f32 %v579, 0.0
      %v584 = vmax.f32 %v580, 0.0
      %v589 = vrot.slane %v582, 4
      %v590 = vrot.slane %v584, 4
      %vm591 = vcmask 1043456
      %v592 = vsel %vm591, %v581, %v589
      %v593 = vsel %vm591, %v589, %v581
      %v594 = vrot.slane %v593, 4
      %v595 = vsel %vm591, %v583, %v590
      %v596 = vsel %vm591, %v590, %v583
      %v597 = vrot.slane %v596, 4
      %v603 = vunpack.c.l.s4 1966171168
      %v604 = vunpack.c.0.s8 %v603
      %v605 = vperm.slane %v592, %v604
      %v607 = vunpack.c.l.s4 1966171168
      %v608 = vunpack.c.0.s8 %v607
      %v609 = vperm.slane %v594, %v608
      %v611 = vunpack.c.l.s4 1966171168
      %v612 = vunpack.c.0.s8 %v611
      %v613 = vperm.slane %v595, %v612
      %v615 = vunpack.c.l.s4 1966171168
      %v616 = vunpack.c.0.s8 %v615
      %v617 = vperm.slane %v597, %v616
      %v622 = vrot.slane %v605, 4
      %v623 = vrot.slane %v609, 4
      %v624 = vrot.slane %v613, 4
      %v625 = vrot.slane %v617, 4
      %v630 = vmax.f32 %v605, %v622
      %v631 = vmax.f32 %v609, %v623
      %v632 = vmax.f32 %v613, %v624
      %v633 = vmax.f32 %v617, %v625
      %v638 = vrot.slane %v630, 2
      %v639 = vrot.slane %v631, 2
      %v640 = vrot.slane %v632, 2
      %v641 = vrot.slane %v633, 2
      %646 = vrot.lane.b32.xlu0 %v630, 96
      %v647 = vpop.permute.xlu0 %646
      %648 = vrot.lane.b32.xlu0 %v631, 96
      %v649 = vpop.permute.xlu0 %648
      %650 = vrot.lane.b32.xlu0 %v632, 96
      %v651 = vpop.permute.xlu0 %650
      %652 = vrot.lane.b32.xlu0 %v633, 96
      %v653 = vpop.permute.xlu0 %652
      %v654 = vrot.slane %v647, 2
      %v655 = vrot.slane %v649, 2
      %v656 = vrot.slane %v651, 2
      %v657 = vrot.slane %v653, 2
      %662 = vrot.lane.b32.xlu0 %v630, 64
      %v663 = vpop.permute.xlu0 %662
      %664 = vrot.lane.b32.xlu0 %v631, 64
      %v665 = vpop.permute.xlu0 %664
      %666 = vrot.lane.b32.xlu0 %v632, 64
      %v667 = vpop.permute.xlu0 %666
      %668 = vrot.lane.b32.xlu0 %v633, 64
      %v669 = vpop.permute.xlu0 %668
      %v670 = vrot.slane %v663, 2
      %v671 = vrot.slane %v665, 2
      %v672 = vrot.slane %v667, 2
      %v673 = vrot.slane %v669, 2
      %678 = vrot.lane.b32.xlu0 %v630, 32
      %v679 = vpop.permute.xlu0 %678
      %680 = vrot.lane.b32.xlu0 %v631, 32
      %v681 = vpop.permute.xlu0 %680
      %682 = vrot.lane.b32.xlu0 %v632, 32
      %v683 = vpop.permute.xlu0 %682
      %684 = vrot.lane.b32.xlu0 %v633, 32
      %v685 = vpop.permute.xlu0 %684
      %v686 = vrot.slane %v679, 2
      %v687 = vrot.slane %v681, 2
      %v688 = vrot.slane %v683, 2
      %v689 = vrot.slane %v685, 2
      %v706 = vrot.slane %v647, 4
      %vm707 = vcmask 1047556
      %v708 = vsel %vm707, %v706, %v630
      %v710 = vunpack.c.l.s4 1934713408
      %v711 = vunpack.c.0.s8 %v710
      %v712 = vperm.slane %v708, %v711
      %v713 = vrot.slane %v712, 4
      %v714 = vsel %vm707, 0.0, %v713
      %v715 = vrot.slane %v679, 4
      %v716 = vsel %vm707, %v715, %v663
      %v718 = vunpack.c.l.s4 1934713408
      %v719 = vunpack.c.0.s8 %v718
      %v720 = vperm.slane %v716, %v719
      %v721 = vrot.slane %v720, 4
      %v722 = vsel %vm707, 0.0, %v721
      %v723 = vrot.slane %v654, 4
      %v724 = vsel %vm707, %v723, %v638
      %v726 = vunpack.c.l.s4 1934713408
      %v727 = vunpack.c.0.s8 %v726
      %v728 = vperm.slane %v724, %v727
      %v729 = vrot.slane %v728, 4
      %v730 = vsel %vm707, 0.0, %v729
      %v731 = vrot.slane %v686, 4
      %v732 = vsel %vm707, %v731, %v670
      %v734 = vunpack.c.l.s4 1934713408
      %v735 = vunpack.c.0.s8 %v734
      %v736 = vperm.slane %v732, %v735
      %v737 = vrot.slane %v736, 4
      %v738 = vsel %vm707, 0.0, %v737
      %v739 = vrot.slane %v649, 4
      %v740 = vsel %vm707, %v739, %v631
      %v742 = vunpack.c.l.s4 1934713408
      %v743 = vunpack.c.0.s8 %v742
      %v744 = vperm.slane %v740, %v743
      %v745 = vrot.slane %v744, 4
      %v746 = vsel %vm707, 0.0, %v745
      %v747 = vrot.slane %v681, 4
      %v748 = vsel %vm707, %v747, %v665
      %v750 = vunpack.c.l.s4 1934713408
      %v751 = vunpack.c.0.s8 %v750
      %v752 = vperm.slane %v748, %v751
      %v753 = vrot.slane %v752, 4
      %v754 = vsel %vm707, 0.0, %v753
      %v755 = vrot.slane %v655, 4
      %v756 = vsel %vm707, %v755, %v639
      %v758 = vunpack.c.l.s4 1934713408
      %v759 = vunpack.c.0.s8 %v758
      %v760 = vperm.slane %v756, %v759
      %v761 = vrot.slane %v760, 4
      %v762 = vsel %vm707, 0.0, %v761
      %v763 = vrot.slane %v687, 4
      %v764 = vsel %vm707, %v763, %v671
      %v766 = vunpack.c.l.s4 1934713408
      %v767 = vunpack.c.0.s8 %v766
      %v768 = vperm.slane %v764, %v767
      %v769 = vrot.slane %v768, 4
      %v770 = vsel %vm707, 0.0, %v769
      %v771 = vrot.slane %v651, 4
      %v772 = vsel %vm707, %v771, %v632
      %v774 = vunpack.c.l.s4 1934713408
      %v775 = vunpack.c.0.s8 %v774
      %v776 = vperm.slane %v772, %v775
      %v777 = vrot.slane %v776, 4
      %v778 = vsel %vm707, 0.0, %v777
      %v779 = vrot.slane %v683, 4
      %v780 = vsel %vm707, %v779, %v667
      %v782 = vunpack.c.l.s4 1934713408
      %v783 = vunpack.c.0.s8 %v782
      %v784 = vperm.slane %v780, %v783
      %v785 = vrot.slane %v784, 4
      %v786 = vsel %vm707, 0.0, %v785
      %v787 = vrot.slane %v656, 4
      %v788 = vsel %vm707, %v787, %v640
      %v790 = vunpack.c.l.s4 1934713408
      %v791 = vunpack.c.0.s8 %v790
      %v792 = vperm.slane %v788, %v791
      %v793 = vrot.slane %v792, 4
      %v794 = vsel %vm707, 0.0, %v793
      %v795 = vrot.slane %v688, 4
      %v796 = vsel %vm707, %v795, %v672
      %v798 = vunpack.c.l.s4 1934713408
      %v799 = vunpack.c.0.s8 %v798
      %v800 = vperm.slane %v796, %v799
      %v801 = vrot.slane %v800, 4
      %v802 = vsel %vm707, 0.0, %v801
      %v803 = vrot.slane %v653, 4
      %v804 = vsel %vm707, %v803, %v633
      %v806 = vunpack.c.l.s4 1934713408
      %v807 = vunpack.c.0.s8 %v806
      %v808 = vperm.slane %v804, %v807
      %v809 = vrot.slane %v808, 4
      %v810 = vsel %vm707, 0.0, %v809
      %v811 = vrot.slane %v685, 4
      %v812 = vsel %vm707, %v811, %v669
      %v814 = vunpack.c.l.s4 1934713408
      %v815 = vunpack.c.0.s8 %v814
      %v816 = vperm.slane %v812, %v815
      %v817 = vrot.slane %v816, 4
      %v818 = vsel %vm707, 0.0, %v817
      %v819 = vrot.slane %v657, 4
      %v820 = vsel %vm707, %v819, %v641
      %v822 = vunpack.c.l.s4 1934713408
      %v823 = vunpack.c.0.s8 %v822
      %v824 = vperm.slane %v820, %v823
      %v825 = vrot.slane %v824, 4
      %v826 = vsel %vm707, 0.0, %v825
      %v827 = vrot.slane %v689, 4
      %v828 = vsel %vm707, %v827, %v673
      %v830 = vunpack.c.l.s4 1934713408
      %v831 = vunpack.c.0.s8 %v830
      %v832 = vperm.slane %v828, %v831
      %v833 = vrot.slane %v832, 4
      %v834 = vsel %vm707, 0.0, %v833
      %867 = vrot.lane.b32.xlu0 %v712, 112
      %v868 = vpop.permute.xlu0 %867
      %869 = vrot.lane.b32.xlu0 %v720, 112
      %v870 = vpop.permute.xlu0 %869
      %871 = vrot.lane.b32.xlu0 %v728, 112
      %v872 = vpop.permute.xlu0 %871
      %873 = vrot.lane.b32.xlu0 %v736, 112
      %v874 = vpop.permute.xlu0 %873
      %875 = vrot.lane.b32.xlu0 %v714, 112
      %v876 = vpop.permute.xlu0 %875
      %877 = vrot.lane.b32.xlu0 %v722, 112
      %v878 = vpop.permute.xlu0 %877
      %879 = vrot.lane.b32.xlu0 %v730, 112
      %v880 = vpop.permute.xlu0 %879
      %881 = vrot.lane.b32.xlu0 %v738, 112
      %v882 = vpop.permute.xlu0 %881
      %883 = vrot.lane.b32.xlu0 %v744, 112
      %v884 = vpop.permute.xlu0 %883
      %885 = vrot.lane.b32.xlu0 %v752, 112
      %v886 = vpop.permute.xlu0 %885
      %887 = vrot.lane.b32.xlu0 %v760, 112
      %v888 = vpop.permute.xlu0 %887
      %889 = vrot.lane.b32.xlu0 %v768, 112
      %v890 = vpop.permute.xlu0 %889
      %891 = vrot.lane.b32.xlu0 %v746, 112
      %v892 = vpop.permute.xlu0 %891
      %893 = vrot.lane.b32.xlu0 %v754, 112
      %v894 = vpop.permute.xlu0 %893
      %895 = vrot.lane.b32.xlu0 %v762, 112
      %v896 = vpop.permute.xlu0 %895
      %897 = vrot.lane.b32.xlu0 %v770, 112
      %v898 = vpop.permute.xlu0 %897
      %899 = vrot.lane.b32.xlu0 %v776, 112
      %v900 = vpop.permute.xlu0 %899
      %901 = vrot.lane.b32.xlu0 %v784, 112
      %v902 = vpop.permute.xlu0 %901
      %903 = vrot.lane.b32.xlu0 %v792, 112
      %v904 = vpop.permute.xlu0 %903
      %905 = vrot.lane.b32.xlu0 %v800, 112
      %v906 = vpop.permute.xlu0 %905
      %907 = vrot.lane.b32.xlu0 %v778, 112
      %v908 = vpop.permute.xlu0 %907
      %909 = vrot.lane.b32.xlu0 %v786, 112
      %v910 = vpop.permute.xlu0 %909
      %911 = vrot.lane.b32.xlu0 %v794, 112
      %v912 = vpop.permute.xlu0 %911
      %913 = vrot.lane.b32.xlu0 %v802, 112
      %v914 = vpop.permute.xlu0 %913
      %915 = vrot.lane.b32.xlu0 %v808, 112
      %v916 = vpop.permute.xlu0 %915
      %917 = vrot.lane.b32.xlu0 %v816, 112
      %v918 = vpop.permute.xlu0 %917
      %919 = vrot.lane.b32.xlu0 %v824, 112
      %v920 = vpop.permute.xlu0 %919
      %921 = vrot.lane.b32.xlu0 %v832, 112
      %v922 = vpop.permute.xlu0 %921
      %923 = vrot.lane.b32.xlu0 %v810, 112
      %v924 = vpop.permute.xlu0 %923
      %925 = vrot.lane.b32.xlu0 %v818, 112
      %v926 = vpop.permute.xlu0 %925
      %927 = vrot.lane.b32.xlu0 %v826, 112
      %v928 = vpop.permute.xlu0 %927
      %929 = vrot.lane.b32.xlu0 %v834, 112
      %v930 = vpop.permute.xlu0 %929
      %v963 = vmax.f32 %v712, %v868
      %v964 = vmax.f32 %v720, %v870
      %v965 = vmax.f32 %v728, %v872
      %v966 = vmax.f32 %v736, %v874
      %v967 = vmax.f32 %v714, %v876
      %v968 = vmax.f32 %v722, %v878
      %v969 = vmax.f32 %v730, %v880
      %v970 = vmax.f32 %v738, %v882
      %v971 = vmax.f32 %v744, %v884
      %v972 = vmax.f32 %v752, %v886
      %v973 = vmax.f32 %v760, %v888
      %v974 = vmax.f32 %v768, %v890
      %v975 = vmax.f32 %v746, %v892
      %v976 = vmax.f32 %v754, %v894
      %v977 = vmax.f32 %v762, %v896
      %v978 = vmax.f32 %v770, %v898
      %v979 = vmax.f32 %v776, %v900
      %v980 = vmax.f32 %v784, %v902
      %v981 = vmax.f32 %v792, %v904
      %v982 = vmax.f32 %v800, %v906
      %v983 = vmax.f32 %v778, %v908
      %v984 = vmax.f32 %v786, %v910
      %v985 = vmax.f32 %v794, %v912
      %v986 = vmax.f32 %v802, %v914
      %v987 = vmax.f32 %v808, %v916
      %v988 = vmax.f32 %v816, %v918
      %v989 = vmax.f32 %v824, %v920
      %v990 = vmax.f32 %v832, %v922
      %v991 = vmax.f32 %v810, %v924
      %v992 = vmax.f32 %v818, %v926
      %v993 = vmax.f32 %v826, %v928
      %v994 = vmax.f32 %v834, %v930
      %995 = vst [vmem:[#allocation3] sm:$0xff] 0.0
      %vm996 = vcmask 523264
      %997 = vst.msk [vmem:[#allocation3 + $0x8] sm:$0xff] %vm996, 0.0
      %998 = vst [vmem:[#allocation3 + $0x10] sm:$0xf] 0.0
      %vm999 = vcmask 519168
      %1000 = vst.msk [vmem:[#allocation3 + $0x18] sm:$0xf] %vm999, 0.0
      %v1001 = vrot.slane %v967, 4
      %v1002 = vsel %vm707, %v1001, %v963
      %v1004 = vunpack.c.l.s4 1934713408
      %v1005 = vunpack.c.0.s8 %v1004
      %v1006 = vperm.slane %v1002, %v1005
      %v1007 = vrot.slane %v1006, 4
      %v1008 = vsel %vm707, 0.0, %v1007
      %v1009 = vrot.slane %v975, 4
      %v1010 = vsel %vm707, %v1009, %v971
      %v1012 = vunpack.c.l.s4 1934713408
      %v1013 = vunpack.c.0.s8 %v1012
      %v1014 = vperm.slane %v1010, %v1013
      %v1015 = vrot.slane %v1014, 4
      %v1016 = vsel %vm707, 0.0, %v1015
      %v1017 = vrot.slane %v983, 4
      %v1018 = vsel %vm707, %v1017, %v979
      %v1020 = vunpack.c.l.s4 1934713408
      %v1021 = vunpack.c.0.s8 %v1020
      %v1022 = vperm.slane %v1018, %v1021
      %v1023 = vrot.slane %v1022, 4
      %v1024 = vsel %vm707, 0.0, %v1023
      %v1025 = vrot.slane %v991, 4
      %v1026 = vsel %vm707, %v1025, %v987
      %v1028 = vunpack.c.l.s4 1934713408
      %v1029 = vunpack.c.0.s8 %v1028
      %v1030 = vperm.slane %v1026, %v1029
      %v1031 = vrot.slane %v1030, 4
      %v1032 = vsel %vm707, 0.0, %v1031
      %v1033 = vrot.slane %v968, 4
      %v1034 = vsel %vm707, %v1033, %v964
      %v1036 = vunpack.c.l.s4 1934713408
      %v1037 = vunpack.c.0.s8 %v1036
      %v1038 = vperm.slane %v1034, %v1037
      %v1039 = vrot.slane %v1038, 4
      %v1040 = vsel %vm707, 0.0, %v1039
      %v1041 = vrot.slane %v976, 4
      %v1042 = vsel %vm707, %v1041, %v972
      %v1044 = vunpack.c.l.s4 1934713408
      %v1045 = vunpack.c.0.s8 %v1044
      %v1046 = vperm.slane %v1042, %v1045
      %v1047 = vrot.slane %v1046, 4
      %v1048 = vsel %vm707, 0.0, %v1047
      %v1049 = vrot.slane %v984, 4
      %v1050 = vsel %vm707, %v1049, %v980
      %v1052 = vunpack.c.l.s4 1934713408
      %v1053 = vunpack.c.0.s8 %v1052
      %v1054 = vperm.slane %v1050, %v1053
      %v1055 = vrot.slane %v1054, 4
      %v1056 = vsel %vm707, 0.0, %v1055
      %v1057 = vrot.slane %v992, 4
      %v1058 = vsel %vm707, %v1057, %v988
      %v1060 = vunpack.c.l.s4 1934713408
      %v1061 = vunpack.c.0.s8 %v1060
      %v1062 = vperm.slane %v1058, %v1061
      %v1063 = vrot.slane %v1062, 4
      %v1064 = vsel %vm707, 0.0, %v1063
      %v1065 = vrot.slane %v969, 4
      %v1066 = vsel %vm707, %v1065, %v965
      %v1068 = vunpack.c.l.s4 1934713408
      %v1069 = vunpack.c.0.s8 %v1068
      %v1070 = vperm.slane %v1066, %v1069
      %v1071 = vrot.slane %v1070, 4
      %v1072 = vsel %vm707, 0.0, %v1071
      %v1073 = vrot.slane %v977, 4
      %v1074 = vsel %vm707, %v1073, %v973
      %v1076 = vunpack.c.l.s4 1934713408
      %v1077 = vunpack.c.0.s8 %v1076
      %v1078 = vperm.slane %v1074, %v1077
      %v1079 = vrot.slane %v1078, 4
      %v1080 = vsel %vm707, 0.0, %v1079
      %v1081 = vrot.slane %v985, 4
      %v1082 = vsel %vm707, %v1081, %v981
      %v1084 = vunpack.c.l.s4 1934713408
      %v1085 = vunpack.c.0.s8 %v1084
      %v1086 = vperm.slane %v1082, %v1085
      %v1087 = vrot.slane %v1086, 4
      %v1088 = vsel %vm707, 0.0, %v1087
      %v1089 = vrot.slane %v993, 4
      %v1090 = vsel %vm707, %v1089, %v989
      %v1092 = vunpack.c.l.s4 1934713408
      %v1093 = vunpack.c.0.s8 %v1092
      %v1094 = vperm.slane %v1090, %v1093
      %v1095 = vrot.slane %v1094, 4
      %v1096 = vsel %vm707, 0.0, %v1095
      %v1097 = vrot.slane %v970, 4
      %v1098 = vsel %vm707, %v1097, %v966
      %v1100 = vunpack.c.l.s4 1934713408
      %v1101 = vunpack.c.0.s8 %v1100
      %v1102 = vperm.slane %v1098, %v1101
      %v1103 = vrot.slane %v1102, 4
      %v1104 = vsel %vm707, 0.0, %v1103
      %v1105 = vrot.slane %v978, 4
      %v1106 = vsel %vm707, %v1105, %v974
      %v1108 = vunpack.c.l.s4 1934713408
      %v1109 = vunpack.c.0.s8 %v1108
      %v1110 = vperm.slane %v1106, %v1109
      %v1111 = vrot.slane %v1110, 4
      %v1112 = vsel %vm707, 0.0, %v1111
      %v1113 = vrot.slane %v986, 4
      %v1114 = vsel %vm707, %v1113, %v982
      %v1116 = vunpack.c.l.s4 1934713408
      %v1117 = vunpack.c.0.s8 %v1116
      %v1118 = vperm.slane %v1114, %v1117
      %v1119 = vrot.slane %v1118, 4
      %v1120 = vsel %vm707, 0.0, %v1119
      %v1121 = vrot.slane %v994, 4
      %v1122 = vsel %vm707, %v1121, %v990
      %v1124 = vunpack.c.l.s4 1934713408
      %v1125 = vunpack.c.0.s8 %v1124
      %v1126 = vperm.slane %v1122, %v1125
      %v1127 = vrot.slane %v1126, 4
      %v1128 = vsel %vm707, 0.0, %v1127
      %1133 = vst [vmem:[#allocation1] ss:$4 sm:$0xff] %v1006
      %s1134 = scalar_lea.vmem [#allocation1], 1
      %1135 = vst [vmem:[%s1134] ss:$4 sm:$0xff] %v1014
      %s1136 = scalar_lea.vmem [#allocation1], 2
      %1137 = vst [vmem:[%s1136] ss:$4 sm:$0xff] %v1022
      %s1138 = scalar_lea.vmem [#allocation1], 3
      %1139 = vst [vmem:[%s1138] ss:$4 sm:$0xff] %v1030
      %v1140 = vld.sshfl [vmem:[#allocation1] sm:$0xff pattern:$0x73625140]
      %1146 = vst [vmem:[#allocation1] ss:$4 sm:$0xff] %v1008
      %s1147 = scalar_lea.vmem [#allocation1], 1
      %1148 = vst [vmem:[%s1147] ss:$4 sm:$0xff] %v1016
      %s1149 = scalar_lea.vmem [#allocation1], 2
      %1150 = vst [vmem:[%s1149] ss:$4 sm:$0xff] %v1024
      %s1151 = scalar_lea.vmem [#allocation1], 3
      %1152 = vst [vmem:[%s1151] ss:$4 sm:$0xff] %v1032
      %v1153 = vld.sshfl [vmem:[#allocation1] sm:$0xff pattern:$0x73625140]
      %1154 = vrot.lane.b32.xlu0 %v1153, 16
      %v1155 = vpop.permute.xlu0 %1154
      %1161 = vst [vmem:[#allocation1] ss:$4 sm:$0xff] %v1038
      %s1162 = scalar_lea.vmem [#allocation1], 1
      %1163 = vst [vmem:[%s1162] ss:$4 sm:$0xff] %v1046
      %s1164 = scalar_lea.vmem [#allocation1], 2
      %1165 = vst [vmem:[%s1164] ss:$4 sm:$0xff] %v1054
      %s1166 = scalar_lea.vmem [#allocation1], 3
      %1167 = vst [vmem:[%s1166] ss:$4 sm:$0xff] %v1062
      %v1168 = vld.sshfl [vmem:[#allocation1] sm:$0xff pattern:$0x73625140]
      %1169 = vrot.lane.b32.xlu0 %v1168, 32
      %v1170 = vpop.permute.xlu0 %1169
      %1176 = vst [vmem:[#allocation1] ss:$4 sm:$0xff] %v1040
      %s1177 = scalar_lea.vmem [#allocation1], 1
      %1178 = vst [vmem:[%s1177] ss:$4 sm:$0xff] %v1048
      %s1179 = scalar_lea.vmem [#allocation1], 2
      %1180 = vst [vmem:[%s1179] ss:$4 sm:$0xff] %v1056
      %s1181 = scalar_lea.vmem [#allocation1], 3
      %1182 = vst [vmem:[%s1181] ss:$4 sm:$0xff] %v1064
      %v1183 = vld.sshfl [vmem:[#allocation1] sm:$0xff pattern:$0x73625140]
      %1184 = vrot.lane.b32.xlu0 %v1183, 48
      %v1185 = vpop.permute.xlu0 %1184
      %1191 = vst [vmem:[#allocation1] ss:$4 sm:$0xff] %v1070
      %s1192 = scalar_lea.vmem [#allocation1], 1
      %1193 = vst [vmem:[%s1192] ss:$4 sm:$0xff] %v1078
      %s1194 = scalar_lea.vmem [#allocation1], 2
      %1195 = vst [vmem:[%s1194] ss:$4 sm:$0xff] %v1086
      %s1196 = scalar_lea.vmem [#allocation1], 3
      %1197 = vst [vmem:[%s1196] ss:$4 sm:$0xff] %v1094
      %v1198 = vld.sshfl [vmem:[#allocation1] sm:$0xff pattern:$0x73625140]
      %1199 = vrot.lane.b32.xlu0 %v1198, 64
      %v1200 = vpop.permute.xlu0 %1199
      %1206 = vst [vmem:[#allocation1] ss:$4 sm:$0xff] %v1072
      %s1207 = scalar_lea.vmem [#allocation1], 1
      %1208 = vst [vmem:[%s1207] ss:$4 sm:$0xff] %v1080
      %s1209 = scalar_lea.vmem [#allocation1], 2
      %1210 = vst [vmem:[%s1209] ss:$4 sm:$0xff] %v1088
      %s1211 = scalar_lea.vmem [#allocation1], 3
      %1212 = vst [vmem:[%s1211] ss:$4 sm:$0xff] %v1096
      %v1213 = vld.sshfl [vmem:[#allocation1] sm:$0xff pattern:$0x73625140]
      %1214 = vrot.lane.b32.xlu0 %v1213, 80
      %v1215 = vpop.permute.xlu0 %1214
      %1221 = vst [vmem:[#allocation1] ss:$4 sm:$0xff] %v1102
      %s1222 = scalar_lea.vmem [#allocation1], 1
      %1223 = vst [vmem:[%s1222] ss:$4 sm:$0xff] %v1110
      %s1224 = scalar_lea.vmem [#allocation1], 2
      %1225 = vst [vmem:[%s1224] ss:$4 sm:$0xff] %v1118
      %s1226 = scalar_lea.vmem [#allocation1], 3
      %1227 = vst [vmem:[%s1226] ss:$4 sm:$0xff] %v1126
      %v1228 = vld.sshfl [vmem:[#allocation1] sm:$0xff pattern:$0x73625140]
      %1229 = vrot.lane.b32.xlu0 %v1228, 96
      %v1230 = vpop.permute.xlu0 %1229
      %1236 = vst [vmem:[#allocation1] ss:$4 sm:$0xff] %v1104
      %s1237 = scalar_lea.vmem [#allocation1], 1
      %1238 = vst [vmem:[%s1237] ss:$4 sm:$0xff] %v1112
      %s1239 = scalar_lea.vmem [#allocation1], 2
      %1240 = vst [vmem:[%s1239] ss:$4 sm:$0xff] %v1120
      %s1241 = scalar_lea.vmem [#allocation1], 3
      %1242 = vst [vmem:[%s1241] ss:$4 sm:$0xff] %v1128
      %v1243 = vld.sshfl [vmem:[#allocation1] sm:$0xff pattern:$0x73625140]
      %1244 = vrot.lane.b32.xlu0 %v1243, 112
      %v1245 = vpop.permute.xlu0 %1244
      %vm1247 = vcmask 130048
      %v1248 = vsel %vm1247, %v1140, %v1155
      %vm1249 = vcmask 261120
      %v1250 = vsel %vm1249, %v1248, %v1170
      %vm1251 = vcmask 392192
      %v1252 = vsel %vm1251, %v1250, %v1185
      %v1253 = vsel %vm996, %v1252, %v1200
      %vm1254 = vcmask 654336
      %v1255 = vsel %vm1254, %v1253, %v1215
      %vm1256 = vcmask 785408
      %v1257 = vsel %vm1256, %v1255, %v1230
      %vm1258 = vcmask 916480
      %v1259 = vsel %vm1258, %v1257, %v1245
      %v1261 = vrot.slane %v1259, 6
      %1262 = vrot.lane.b32.xlu0 %v1261, 32
      %v1263 = vpop.permute.xlu0 %1262
      %vm1265 = vcmask 1047810
      %1266 = vst.msk [vmem:[#allocation3] sm:$0xfc] %vm1265, %v1263
      %vm1267 = vcmask 261122
      %1268 = vst.msk [vmem:[#allocation3 + $0x8] sm:$0xfc] %vm1267, %v1263
      %vm1269 = vcmask 1041664
      %1270 = vst.msk [vmem:[#allocation3 + $0x10] sm:$0x3] %vm1269, %v1263
      %vm1271 = vcmask 254976
      %1272 = vst.msk [vmem:[#allocation3 + $0x18] sm:$0x3] %vm1271, %v1263
      %v1273 = vld [vmem:[#allocation3] sm:$0xff]
      %v1274 = vld [vmem:[#allocation3 + $0x8] sm:$0xff]
      %v1275 = vld [vmem:[#allocation3 + $0x10] sm:$0xf]
      %v1276 = vld [vmem:[#allocation3 + $0x18] sm:$0xf]
      %v1277 = vpack.c.bf16 %v1273, %v1273
      %v1278 = vpack.c.bf16 %v1274, %v1274
      %v1279 = vld [vmem:[%s3] sm:$0xff]
      %v1280 = vld [vmem:[%s3 + $0x8] sm:$0xff]
      %v1281 = vld [vmem:[%s3 + $0x10] sm:$0xff]
      %v1282 = vld [vmem:[%s3 + $0x18] sm:$0xff]
      %v1283 = vld [vmem:[%s3 + $0x20] sm:$0xff]
      %v1284 = vld [vmem:[%s3 + $0x28] sm:$0xff]
      %v1285 = vld [vmem:[%s3 + $0x30] sm:$0xff]
      %v1286 = vld [vmem:[%s3 + $0x38] sm:$0xff]
      %v1287 = vld [vmem:[%s3 + $0x40] sm:$0xff]
      %v1288 = vld [vmem:[%s3 + $0x48] sm:$0xff]
      %v1289 = vld [vmem:[%s3 + $0x50] sm:$0xff]
      %v1290 = vld [vmem:[%s3 + $0x58] sm:$0xff]
      %v1291 = vld [vmem:[%s3 + $0x60] sm:$0xff]
      %v1292 = vld [vmem:[%s3 + $0x68] sm:$0xff]
      %v1293 = vld [vmem:[%s3 + $0x70] sm:$0xff]
      %v1294 = vld [vmem:[%s3 + $0x78] sm:$0xff]
      %v1295 = vld [vmem:[%s3 + $0x80] sm:$0xff]
      %v1296 = vld [vmem:[%s3 + $0x88] sm:$0xff]
      %v1297 = vld [vmem:[%s3 + $0x90] sm:$0xff]
      %v1298 = vld [vmem:[%s3 + $0x98] sm:$0xff]
      %v1299 = vld [vmem:[%s3 + $0xa0] sm:$0xff]
      %v1300 = vld [vmem:[%s3 + $0xa8] sm:$0xff]
      %v1301 = vld [vmem:[%s3 + $0xb0] sm:$0xff]
      %v1302 = vld [vmem:[%s3 + $0xb8] sm:$0xff]
      %v1303 = vpack.c.bf16 %v1275, %v1273
      %v1304 = vpack.c.bf16 %v1276, %v1274
      %s1305 = scalar_lea.vmem %s3, 192
      %v1306 = vld [vmem:[%s1305] sm:$0xff]
      %v1307 = vld [vmem:[%s1305 + $0x8] sm:$0xff]
      %v1308 = vld [vmem:[%s1305 + $0x10] sm:$0xff]
      %v1309 = vld [vmem:[%s1305 + $0x18] sm:$0xff]
      %v1310 = vld [vmem:[%s1305 + $0x20] sm:$0xff]
      %v1311 = vld [vmem:[%s1305 + $0x28] sm:$0xff]
      %v1312 = vld [vmem:[%s1305 + $0x30] sm:$0xff]
      %v1313 = vld [vmem:[%s1305 + $0x38] sm:$0xff]
      %v1314 = vld [vmem:[%s1305 + $0x40] sm:$0xff]
      %v1315 = vld [vmem:[%s1305 + $0x48] sm:$0xff]
      %v1316 = vld [vmem:[%s1305 + $0x50] sm:$0xff]
      %v1317 = vld [vmem:[%s1305 + $0x58] sm:$0xff]
      %v1318 = vld [vmem:[%s1305 + $0x60] sm:$0xff]
      %v1319 = vld [vmem:[%s1305 + $0x68] sm:$0xff]
      %v1320 = vld [vmem:[%s1305 + $0x70] sm:$0xff]
      %v1321 = vld [vmem:[%s1305 + $0x78] sm:$0xff]
      %v1322 = vld [vmem:[%s1305 + $0x80] sm:$0xff]
      %v1323 = vld [vmem:[%s1305 + $0x88] sm:$0xff]
      %v1324 = vld [vmem:[%s1305 + $0x90] sm:$0xff]
      %v1325 = vld [vmem:[%s1305 + $0x98] sm:$0xff]
      %v1326 = vld [vmem:[%s1305 + $0xa0] sm:$0xff]
      %v1327 = vld [vmem:[%s1305 + $0xa8] sm:$0xff]
      %v1328 = vld [vmem:[%s1305 + $0xb0] sm:$0xff]
      %v1329 = vld [vmem:[%s1305 + $0xb8] sm:$0xff]
      %v1331 = vshrl.u32 %v1303, 16
      %v1333 = vshll.u32 %v1303, 16
      %v1335 = vrot.slane %v1333, 1
      %v1336 = vor.u32 %v1331, %v1335
      %v1338 = vshrl.u32 %v1304, 16
      %v1340 = vshll.u32 %v1304, 16
      %v1342 = vrot.slane %v1340, 1
      %v1343 = vor.u32 %v1338, %v1342
      %v1369 = vunpack.c.l.b16 %v1306
      %v1370 = vunpack.c.h.b16 %v1306
      %v1371 = vunpack.c.l.b16 %v1307
      %v1372 = vunpack.c.h.b16 %v1307
      %v1373 = vunpack.c.l.b16 %v1308
      %v1374 = vunpack.c.h.b16 %v1308
      %v1375 = vunpack.c.l.b16 %v1309
      %v1376 = vunpack.c.h.b16 %v1309
      %v1377 = vunpack.c.l.b16 %v1310
      %v1378 = vunpack.c.h.b16 %v1310
      %v1379 = vunpack.c.l.b16 %v1311
      %v1380 = vunpack.c.h.b16 %v1311
      %v1381 = vunpack.c.l.b16 %v1312
      %v1382 = vunpack.c.h.b16 %v1312
      %v1383 = vunpack.c.l.b16 %v1313
      %v1384 = vunpack.c.h.b16 %v1313
      %v1385 = vunpack.c.l.b16 %v1314
      %v1386 = vunpack.c.h.b16 %v1314
      %v1387 = vunpack.c.l.b16 %v1315
      %v1388 = vunpack.c.h.b16 %v1315
      %v1389 = vunpack.c.l.b16 %v1316
      %v1390 = vunpack.c.h.b16 %v1316
      %v1391 = vunpack.c.l.b16 %v1317
      %v1392 = vunpack.c.h.b16 %v1317
      %v1393 = vunpack.c.l.b16 %v1318
      %v1394 = vunpack.c.h.b16 %v1318
      %v1395 = vunpack.c.l.b16 %v1319
      %v1396 = vunpack.c.h.b16 %v1319
      %v1397 = vunpack.c.l.b16 %v1320
      %v1398 = vunpack.c.h.b16 %v1320
      %v1399 = vunpack.c.l.b16 %v1321
      %v1400 = vunpack.c.h.b16 %v1321
      %v1401 = vunpack.c.l.b16 %v1322
      %v1402 = vunpack.c.h.b16 %v1322
      %v1403 = vunpack.c.l.b16 %v1323
      %v1404 = vunpack.c.h.b16 %v1323
      %v1405 = vunpack.c.l.b16 %v1324
      %v1406 = vunpack.c.h.b16 %v1324
      %v1407 = vunpack.c.l.b16 %v1325
      %v1408 = vunpack.c.h.b16 %v1325
      %v1409 = vunpack.c.l.b16 %v1326
      %v1410 = vunpack.c.h.b16 %v1326
      %v1411 = vunpack.c.l.b16 %v1327
      %v1412 = vunpack.c.h.b16 %v1327
      %v1413 = vunpack.c.l.b16 %v1328
      %v1414 = vunpack.c.h.b16 %v1328
      %v1415 = vunpack.c.l.b16 %v1329
      %v1416 = vunpack.c.h.b16 %v1329
      %v1417 = vpack.c.b16 %v1371, %v1369
      %v1418 = vpack.c.b16 %v1372, %v1370
      %v1419 = vpack.c.b16 %v1375, %v1373
      %v1420 = vpack.c.b16 %v1376, %v1374
      %v1421 = vpack.c.b16 %v1379, %v1377
      %v1422 = vpack.c.b16 %v1380, %v1378
      %v1423 = vpack.c.b16 %v1383, %v1381
      %v1424 = vpack.c.b16 %v1384, %v1382
      %v1425 = vpack.c.b16 %v1387, %v1385
      %v1426 = vpack.c.b16 %v1388, %v1386
      %v1427 = vpack.c.b16 %v1391, %v1389
      %v1428 = vpack.c.b16 %v1392, %v1390
      %v1429 = vpack.c.b16 %v1395, %v1393
      %v1430 = vpack.c.b16 %v1396, %v1394
      %v1431 = vpack.c.b16 %v1399, %v1397
      %v1432 = vpack.c.b16 %v1400, %v1398
      %v1433 = vpack.c.b16 %v1403, %v1401
      %v1434 = vpack.c.b16 %v1404, %v1402
      %v1435 = vpack.c.b16 %v1407, %v1405
      %v1436 = vpack.c.b16 %v1408, %v1406
      %v1437 = vpack.c.b16 %v1411, %v1409
      %v1438 = vpack.c.b16 %v1412, %v1410
      %v1439 = vpack.c.b16 %v1415, %v1413
      %v1440 = vpack.c.b16 %v1416, %v1414
      %v1466 = vsel %vm996, %v1343, 0
      %1468 = vmatpush.bf16.msra.mxu0 %v1431
      %1469 = vmatpush.bf16.msra.mxu0 %v1429
      %1470 = vmatpush.bf16.msra.mxu0 %v1427
      %1471 = vmatpush.bf16.msra.mxu0 %v1425
      %1472 = vmatpush.bf16.msra.mxu0 %v1423
      %1473 = vmatpush.bf16.msra.mxu0 %v1421
      %1474 = vmatpush.bf16.msra.mxu0 %v1419
      %1475 = vmatpush.bf16.msra.mxu0 %v1417
      %1476 = vmatmul.bf16.gmra.mxu0 %v1336
      %v1477 = vpop.f32.mrf.mxu0
      %v1478 = vadd.f32 0.0, %v1477
      %v1479 = vpop.f32.mrf.mxu0
      %1480 = vdwg.mxu0
      %1481 = vmatpush.bf16.msra.mxu0 0
      %1482 = vmatpush.bf16.msra.mxu0 0
      %1483 = vmatpush.bf16.msra.mxu0 0
      %1484 = vmatpush.bf16.msra.mxu0 0
      %1485 = vmatpush.bf16.msra.mxu0 %v1439
      %1486 = vmatpush.bf16.msra.mxu0 %v1437
      %1487 = vmatpush.bf16.msra.mxu0 %v1435
      %1488 = vmatpush.bf16.msra.mxu0 %v1433
      %1489 = vmatmul.bf16.gmra.mxu0 %v1466
      %v1490 = vpop.f32.mrf.mxu0
      %v1491 = vadd.f32 %v1478, %v1490
      %v1492 = vpop.f32.mrf.mxu0
      %1493 = vdwg.mxu0
      %1494 = vmatpush.bf16.msra.mxu0 %v1432
      %1495 = vmatpush.bf16.msra.mxu0 %v1430
      %1496 = vmatpush.bf16.msra.mxu0 %v1428
      %1497 = vmatpush.bf16.msra.mxu0 %v1426
      %1498 = vmatpush.bf16.msra.mxu0 %v1424
      %1499 = vmatpush.bf16.msra.mxu0 %v1422
      %1500 = vmatpush.bf16.msra.mxu0 %v1420
      %1501 = vmatpush.bf16.msra.mxu0 %v1418
      %1502 = vmatmul.bf16.gmra.mxu0 %v1336
      %v1503 = vpop.f32.mrf.mxu0
      %v1504 = vadd.f32 0.0, %v1503
      %v1505 = vpop.f32.mrf.mxu0
      %1506 = vdwg.mxu0
      %1507 = vmatpush.bf16.msra.mxu0 0
      %1508 = vmatpush.bf16.msra.mxu0 0
      %1509 = vmatpush.bf16.msra.mxu0 0
      %1510 = vmatpush.bf16.msra.mxu0 0
      %1511 = vmatpush.bf16.msra.mxu0 %v1440
      %1512 = vmatpush.bf16.msra.mxu0 %v1438
      %1513 = vmatpush.bf16.msra.mxu0 %v1436
      %1514 = vmatpush.bf16.msra.mxu0 %v1434
      %1515 = vmatmul.bf16.gmra.mxu0 %v1466
      %v1516 = vpop.f32.mrf.mxu0
      %v1517 = vadd.f32 %v1504, %v1516
      %v1518 = vpop.f32.mrf.mxu0
      %1519 = vdwg.mxu0
      %v1544 = vunpack.c.l.b16 %v1279
      %v1545 = vunpack.c.h.b16 %v1279
      %v1546 = vunpack.c.l.b16 %v1280
      %v1547 = vunpack.c.h.b16 %v1280
      %v1548 = vunpack.c.l.b16 %v1281
      %v1549 = vunpack.c.h.b16 %v1281
      %v1550 = vunpack.c.l.b16 %v1282
      %v1551 = vunpack.c.h.b16 %v1282
      %v1552 = vunpack.c.l.b16 %v1283
      %v1553 = vunpack.c.h.b16 %v1283
      %v1554 = vunpack.c.l.b16 %v1284
      %v1555 = vunpack.c.h.b16 %v1284
      %v1556 = vunpack.c.l.b16 %v1285
      %v1557 = vunpack.c.h.b16 %v1285
      %v1558 = vunpack.c.l.b16 %v1286
      %v1559 = vunpack.c.h.b16 %v1286
      %v1560 = vunpack.c.l.b16 %v1287
      %v1561 = vunpack.c.h.b16 %v1287
      %v1562 = vunpack.c.l.b16 %v1288
      %v1563 = vunpack.c.h.b16 %v1288
      %v1564 = vunpack.c.l.b16 %v1289
      %v1565 = vunpack.c.h.b16 %v1289
      %v1566 = vunpack.c.l.b16 %v1290
      %v1567 = vunpack.c.h.b16 %v1290
      %v1568 = vunpack.c.l.b16 %v1291
      %v1569 = vunpack.c.h.b16 %v1291
      %v1570 = vunpack.c.l.b16 %v1292
      %v1571 = vunpack.c.h.b16 %v1292
      %v1572 = vunpack.c.l.b16 %v1293
      %v1573 = vunpack.c.h.b16 %v1293
      %v1574 = vunpack.c.l.b16 %v1294
      %v1575 = vunpack.c.h.b16 %v1294
      %v1576 = vunpack.c.l.b16 %v1295
      %v1577 = vunpack.c.h.b16 %v1295
      %v1578 = vunpack.c.l.b16 %v1296
      %v1579 = vunpack.c.h.b16 %v1296
      %v1580 = vunpack.c.l.b16 %v1297
      %v1581 = vunpack.c.h.b16 %v1297
      %v1582 = vunpack.c.l.b16 %v1298
      %v1583 = vunpack.c.h.b16 %v1298
      %v1584 = vunpack.c.l.b16 %v1299
      %v1585 = vunpack.c.h.b16 %v1299
      %v1586 = vunpack.c.l.b16 %v1300
      %v1587 = vunpack.c.h.b16 %v1300
      %v1588 = vunpack.c.l.b16 %v1301
      %v1589 = vunpack.c.h.b16 %v1301
      %v1590 = vunpack.c.l.b16 %v1302
      %v1591 = vunpack.c.h.b16 %v1302
      %v1592 = vpack.c.b16 %v1546, %v1544
      %v1593 = vpack.c.b16 %v1547, %v1545
      %v1594 = vpack.c.b16 %v1550, %v1548
      %v1595 = vpack.c.b16 %v1551, %v1549
      %v1596 = vpack.c.b16 %v1554, %v1552
      %v1597 = vpack.c.b16 %v1555, %v1553
      %v1598 = vpack.c.b16 %v1558, %v1556
      %v1599 = vpack.c.b16 %v1559, %v1557
      %v1600 = vpack.c.b16 %v1562, %v1560
      %v1601 = vpack.c.b16 %v1563, %v1561
      %v1602 = vpack.c.b16 %v1566, %v1564
      %v1603 = vpack.c.b16 %v1567, %v1565
      %v1604 = vpack.c.b16 %v1570, %v1568
      %v1605 = vpack.c.b16 %v1571, %v1569
      %v1606 = vpack.c.b16 %v1574, %v1572
      %v1607 = vpack.c.b16 %v1575, %v1573
      %v1608 = vpack.c.b16 %v1578, %v1576
      %v1609 = vpack.c.b16 %v1579, %v1577
      %v1610 = vpack.c.b16 %v1582, %v1580
      %v1611 = vpack.c.b16 %v1583, %v1581
      %v1612 = vpack.c.b16 %v1586, %v1584
      %v1613 = vpack.c.b16 %v1587, %v1585
      %v1614 = vpack.c.b16 %v1590, %v1588
      %v1615 = vpack.c.b16 %v1591, %v1589
      %v1641 = vsel %vm996, %v1278, 0
      %1643 = vmatpush.bf16.msra.mxu0 %v1606
      %1644 = vmatpush.bf16.msra.mxu0 %v1604
      %1645 = vmatpush.bf16.msra.mxu0 %v1602
      %1646 = vmatpush.bf16.msra.mxu0 %v1600
      %1647 = vmatpush.bf16.msra.mxu0 %v1598
      %1648 = vmatpush.bf16.msra.mxu0 %v1596
      %1649 = vmatpush.bf16.msra.mxu0 %v1594
      %1650 = vmatpush.bf16.msra.mxu0 %v1592
      %1651 = vmatmul.bf16.gmra.mxu0 %v1277
      %v1652 = vpop.f32.mrf.mxu0
      %v1653 = vadd.f32 %v1491, %v1652
      %v1654 = vpop.f32.mrf.mxu0
      %1655 = vdwg.mxu0
      %1656 = vmatpush.bf16.msra.mxu0 0
      %1657 = vmatpush.bf16.msra.mxu0 0
      %1658 = vmatpush.bf16.msra.mxu0 0
      %1659 = vmatpush.bf16.msra.mxu0 0
      %1660 = vmatpush.bf16.msra.mxu0 %v1614
      %1661 = vmatpush.bf16.msra.mxu0 %v1612
      %1662 = vmatpush.bf16.msra.mxu0 %v1610
      %1663 = vmatpush.bf16.msra.mxu0 %v1608
      %1664 = vmatmul.bf16.gmra.mxu0 %v1641
      %v1665 = vpop.f32.mrf.mxu0
      %v1666 = vadd.f32 %v1653, %v1665
      %v1667 = vpop.f32.mrf.mxu0
      %1668 = vdwg.mxu0
      %1669 = vmatpush.bf16.msra.mxu0 %v1607
      %1670 = vmatpush.bf16.msra.mxu0 %v1605
      %1671 = vmatpush.bf16.msra.mxu0 %v1603
      %1672 = vmatpush.bf16.msra.mxu0 %v1601
      %1673 = vmatpush.bf16.msra.mxu0 %v1599
      %1674 = vmatpush.bf16.msra.mxu0 %v1597
      %1675 = vmatpush.bf16.msra.mxu0 %v1595
      %1676 = vmatpush.bf16.msra.mxu0 %v1593
      %1677 = vmatmul.bf16.gmra.mxu0 %v1277
      %v1678 = vpop.f32.mrf.mxu0
      %v1679 = vadd.f32 %v1517, %v1678
      %v1680 = vpop.f32.mrf.mxu0
      %1681 = vdwg.mxu0
      %1682 = vmatpush.bf16.msra.mxu0 0
      %1683 = vmatpush.bf16.msra.mxu0 0
      %1684 = vmatpush.bf16.msra.mxu0 0
      %1685 = vmatpush.bf16.msra.mxu0 0
      %1686 = vmatpush.bf16.msra.mxu0 %v1615
      %1687 = vmatpush.bf16.msra.mxu0 %v1613
      %1688 = vmatpush.bf16.msra.mxu0 %v1611
      %1689 = vmatpush.bf16.msra.mxu0 %v1609
      %1690 = vmatmul.bf16.gmra.mxu0 %v1641
      %v1691 = vpop.f32.mrf.mxu0
      %v1692 = vadd.f32 %v1679, %v1691
      %v1693 = vpop.f32.mrf.mxu0
      %1694 = vdwg.mxu0
      %s1695 = scalar_lea.vmem %s3, 384
      %v1696 = vld [vmem:[%s1695] sm:$0xff]
      %v1697 = vld [vmem:[%s1695 + $0x8] sm:$0xff]
      %v1698 = vld [vmem:[%s1695 + $0x10] sm:$0xff]
      %v1699 = vld [vmem:[%s1695 + $0x18] sm:$0xff]
      %v1700 = vld [vmem:[%s1695 + $0x20] sm:$0xff]
      %v1701 = vld [vmem:[%s1695 + $0x28] sm:$0xff]
      %v1702 = vld [vmem:[%s1695 + $0x30] sm:$0xff]
      %v1703 = vld [vmem:[%s1695 + $0x38] sm:$0xff]
      %v1704 = vld [vmem:[%s1695 + $0x40] sm:$0xff]
      %v1705 = vld [vmem:[%s1695 + $0x48] sm:$0xff]
      %v1706 = vld [vmem:[%s1695 + $0x50] sm:$0xff]
      %v1707 = vld [vmem:[%s1695 + $0x58] sm:$0xff]
      %v1708 = vld [vmem:[%s1695 + $0x60] sm:$0xff]
      %v1709 = vld [vmem:[%s1695 + $0x68] sm:$0xff]
      %v1710 = vld [vmem:[%s1695 + $0x70] sm:$0xff]
      %v1711 = vld [vmem:[%s1695 + $0x78] sm:$0xff]
      %v1712 = vld [vmem:[%s1695 + $0x80] sm:$0xff]
      %v1713 = vld [vmem:[%s1695 + $0x88] sm:$0xff]
      %v1714 = vld [vmem:[%s1695 + $0x90] sm:$0xff]
      %v1715 = vld [vmem:[%s1695 + $0x98] sm:$0xff]
      %v1716 = vld [vmem:[%s1695 + $0xa0] sm:$0xff]
      %v1717 = vld [vmem:[%s1695 + $0xa8] sm:$0xff]
      %v1718 = vld [vmem:[%s1695 + $0xb0] sm:$0xff]
      %v1719 = vld [vmem:[%s1695 + $0xb8] sm:$0xff]
      %v1722 = vrot.slane %v1303, 1
      %v1723 = vrot.slane %v1304, 1
      %v1749 = vunpack.c.l.b16 %v1696
      %v1750 = vunpack.c.h.b16 %v1696
      %v1751 = vunpack.c.l.b16 %v1697
      %v1752 = vunpack.c.h.b16 %v1697
      %v1753 = vunpack.c.l.b16 %v1698
      %v1754 = vunpack.c.h.b16 %v1698
      %v1755 = vunpack.c.l.b16 %v1699
      %v1756 = vunpack.c.h.b16 %v1699
      %v1757 = vunpack.c.l.b16 %v1700
      %v1758 = vunpack.c.h.b16 %v1700
      %v1759 = vunpack.c.l.b16 %v1701
      %v1760 = vunpack.c.h.b16 %v1701
      %v1761 = vunpack.c.l.b16 %v1702
      %v1762 = vunpack.c.h.b16 %v1702
      %v1763 = vunpack.c.l.b16 %v1703
      %v1764 = vunpack.c.h.b16 %v1703
      %v1765 = vunpack.c.l.b16 %v1704
      %v1766 = vunpack.c.h.b16 %v1704
      %v1767 = vunpack.c.l.b16 %v1705
      %v1768 = vunpack.c.h.b16 %v1705
      %v1769 = vunpack.c.l.b16 %v1706
      %v1770 = vunpack.c.h.b16 %v1706
      %v1771 = vunpack.c.l.b16 %v1707
      %v1772 = vunpack.c.h.b16 %v1707
      %v1773 = vunpack.c.l.b16 %v1708
      %v1774 = vunpack.c.h.b16 %v1708
      %v1775 = vunpack.c.l.b16 %v1709
      %v1776 = vunpack.c.h.b16 %v1709
      %v1777 = vunpack.c.l.b16 %v1710
      %v1778 = vunpack.c.h.b16 %v1710
      %v1779 = vunpack.c.l.b16 %v1711
      %v1780 = vunpack.c.h.b16 %v1711
      %v1781 = vunpack.c.l.b16 %v1712
      %v1782 = vunpack.c.h.b16 %v1712
      %v1783 = vunpack.c.l.b16 %v1713
      %v1784 = vunpack.c.h.b16 %v1713
      %v1785 = vunpack.c.l.b16 %v1714
      %v1786 = vunpack.c.h.b16 %v1714
      %v1787 = vunpack.c.l.b16 %v1715
      %v1788 = vunpack.c.h.b16 %v1715
      %v1789 = vunpack.c.l.b16 %v1716
      %v1790 = vunpack.c.h.b16 %v1716
      %v1791 = vunpack.c.l.b16 %v1717
      %v1792 = vunpack.c.h.b16 %v1717
      %v1793 = vunpack.c.l.b16 %v1718
      %v1794 = vunpack.c.h.b16 %v1718
      %v1795 = vunpack.c.l.b16 %v1719
      %v1796 = vunpack.c.h.b16 %v1719
      %v1797 = vpack.c.b16 %v1751, %v1749
      %v1798 = vpack.c.b16 %v1752, %v1750
      %v1799 = vpack.c.b16 %v1755, %v1753
      %v1800 = vpack.c.b16 %v1756, %v1754
      %v1801 = vpack.c.b16 %v1759, %v1757
      %v1802 = vpack.c.b16 %v1760, %v1758
      %v1803 = vpack.c.b16 %v1763, %v1761
      %v1804 = vpack.c.b16 %v1764, %v1762
      %v1805 = vpack.c.b16 %v1767, %v1765
      %v1806 = vpack.c.b16 %v1768, %v1766
      %v1807 = vpack.c.b16 %v1771, %v1769
      %v1808 = vpack.c.b16 %v1772, %v1770
      %v1809 = vpack.c.b16 %v1775, %v1773
      %v1810 = vpack.c.b16 %v1776, %v1774
      %v1811 = vpack.c.b16 %v1779, %v1777
      %v1812 = vpack.c.b16 %v1780, %v1778
      %v1813 = vpack.c.b16 %v1783, %v1781
      %v1814 = vpack.c.b16 %v1784, %v1782
      %v1815 = vpack.c.b16 %v1787, %v1785
      %v1816 = vpack.c.b16 %v1788, %v1786
      %v1817 = vpack.c.b16 %v1791, %v1789
      %v1818 = vpack.c.b16 %v1792, %v1790
      %v1819 = vpack.c.b16 %v1795, %v1793
      %v1820 = vpack.c.b16 %v1796, %v1794
      %v1846 = vsel %vm996, %v1723, 0
      %1848 = vmatpush.bf16.msra.mxu0 %v1811
      %1849 = vmatpush.bf16.msra.mxu0 %v1809
      %1850 = vmatpush.bf16.msra.mxu0 %v1807
      %1851 = vmatpush.bf16.msra.mxu0 %v1805
      %1852 = vmatpush.bf16.msra.mxu0 %v1803
      %1853 = vmatpush.bf16.msra.mxu0 %v1801
      %1854 = vmatpush.bf16.msra.mxu0 %v1799
      %1855 = vmatpush.bf16.msra.mxu0 %v1797
      %1856 = vmatmul.bf16.gmra.mxu0 %v1722
      %v1857 = vpop.f32.mrf.mxu0
      %v1858 = vadd.f32 0.0, %v1857
      %v1859 = vpop.f32.mrf.mxu0
      %1860 = vdwg.mxu0
      %1861 = vmatpush.bf16.msra.mxu0 0
      %1862 = vmatpush.bf16.msra.mxu0 0
      %1863 = vmatpush.bf16.msra.mxu0 0
      %1864 = vmatpush.bf16.msra.mxu0 0
      %1865 = vmatpush.bf16.msra.mxu0 %v1819
      %1866 = vmatpush.bf16.msra.mxu0 %v1817
      %1867 = vmatpush.bf16.msra.mxu0 %v1815
      %1868 = vmatpush.bf16.msra.mxu0 %v1813
      %1869 = vmatmul.bf16.gmra.mxu0 %v1846
      %v1870 = vpop.f32.mrf.mxu0
      %v1871 = vadd.f32 %v1858, %v1870
      %v1872 = vpop.f32.mrf.mxu0
      %1873 = vdwg.mxu0
      %1874 = vmatpush.bf16.msra.mxu0 %v1812
      %1875 = vmatpush.bf16.msra.mxu0 %v1810
      %1876 = vmatpush.bf16.msra.mxu0 %v1808
      %1877 = vmatpush.bf16.msra.mxu0 %v1806
      %1878 = vmatpush.bf16.msra.mxu0 %v1804
      %1879 = vmatpush.bf16.msra.mxu0 %v1802
      %1880 = vmatpush.bf16.msra.mxu0 %v1800
      %1881 = vmatpush.bf16.msra.mxu0 %v1798
      %1882 = vmatmul.bf16.gmra.mxu0 %v1722
      %v1883 = vpop.f32.mrf.mxu0
      %v1884 = vadd.f32 0.0, %v1883
      %v1885 = vpop.f32.mrf.mxu0
      %1886 = vdwg.mxu0
      %1887 = vmatpush.bf16.msra.mxu0 0
      %1888 = vmatpush.bf16.msra.mxu0 0
      %1889 = vmatpush.bf16.msra.mxu0 0
      %1890 = vmatpush.bf16.msra.mxu0 0
      %1891 = vmatpush.bf16.msra.mxu0 %v1820
      %1892 = vmatpush.bf16.msra.mxu0 %v1818
      %1893 = vmatpush.bf16.msra.mxu0 %v1816
      %1894 = vmatpush.bf16.msra.mxu0 %v1814
      %1895 = vmatmul.bf16.gmra.mxu0 %v1846
      %v1896 = vpop.f32.mrf.mxu0
      %v1897 = vadd.f32 %v1884, %v1896
      %v1898 = vpop.f32.mrf.mxu0
      %1899 = vdwg.mxu0
      %v1900 = vadd.f32 %v1666, %v1871
      %v1901 = vadd.f32 %v1692, %v1897
      %s1902 = scalar_lea.vmem %s3, 576
      %v1903 = vld [vmem:[%s1902] sm:$0xff]
      %v1904 = vld [vmem:[%s1902 + $0x8] sm:$0xff]
      %v1905 = vld [vmem:[%s1902 + $0x10] sm:$0xff]
      %v1906 = vld [vmem:[%s1902 + $0x18] sm:$0xff]
      %v1907 = vld [vmem:[%s1902 + $0x20] sm:$0xff]
      %v1908 = vld [vmem:[%s1902 + $0x28] sm:$0xff]
      %v1909 = vld [vmem:[%s1902 + $0x30] sm:$0xff]
      %v1910 = vld [vmem:[%s1902 + $0x38] sm:$0xff]
      %v1911 = vld [vmem:[%s1902 + $0x40] sm:$0xff]
      %v1912 = vld [vmem:[%s1902 + $0x48] sm:$0xff]
      %v1913 = vld [vmem:[%s1902 + $0x50] sm:$0xff]
      %v1914 = vld [vmem:[%s1902 + $0x58] sm:$0xff]
      %v1915 = vld [vmem:[%s1902 + $0x60] sm:$0xff]
      %v1916 = vld [vmem:[%s1902 + $0x68] sm:$0xff]
      %v1917 = vld [vmem:[%s1902 + $0x70] sm:$0xff]
      %v1918 = vld [vmem:[%s1902 + $0x78] sm:$0xff]
      %v1919 = vld [vmem:[%s1902 + $0x80] sm:$0xff]
      %v1920 = vld [vmem:[%s1902 + $0x88] sm:$0xff]
      %v1921 = vld [vmem:[%s1902 + $0x90] sm:$0xff]
      %v1922 = vld [vmem:[%s1902 + $0x98] sm:$0xff]
      %v1923 = vld [vmem:[%s1902 + $0xa0] sm:$0xff]
      %v1924 = vld [vmem:[%s1902 + $0xa8] sm:$0xff]
      %v1925 = vld [vmem:[%s1902 + $0xb0] sm:$0xff]
      %v1926 = vld [vmem:[%s1902 + $0xb8] sm:$0xff]
      %v1927 = vrot.slane %v1331, 1
      %v1928 = vrot.slane %v1333, 2
      %v1929 = vor.u32 %v1927, %v1928
      %v1930 = vrot.slane %v1338, 1
      %v1931 = vrot.slane %v1340, 2
      %v1932 = vor.u32 %v1930, %v1931
      %v1958 = vunpack.c.l.b16 %v1903
      %v1959 = vunpack.c.h.b16 %v1903
      %v1960 = vunpack.c.l.b16 %v1904
      %v1961 = vunpack.c.h.b16 %v1904
      %v1962 = vunpack.c.l.b16 %v1905
      %v1963 = vunpack.c.h.b16 %v1905
      %v1964 = vunpack.c.l.b16 %v1906
      %v1965 = vunpack.c.h.b16 %v1906
      %v1966 = vunpack.c.l.b16 %v1907
      %v1967 = vunpack.c.h.b16 %v1907
      %v1968 = vunpack.c.l.b16 %v1908
      %v1969 = vunpack.c.h.b16 %v1908
      %v1970 = vunpack.c.l.b16 %v1909
      %v1971 = vunpack.c.h.b16 %v1909
      %v1972 = vunpack.c.l.b16 %v1910
      %v1973 = vunpack.c.h.b16 %v1910
      %v1974 = vunpack.c.l.b16 %v1911
      %v1975 = vunpack.c.h.b16 %v1911
      %v1976 = vunpack.c.l.b16 %v1912
      %v1977 = vunpack.c.h.b16 %v1912
      %v1978 = vunpack.c.l.b16 %v1913
      %v1979 = vunpack.c.h.b16 %v1913
      %v1980 = vunpack.c.l.b16 %v1914
      %v1981 = vunpack.c.h.b16 %v1914
      %v1982 = vunpack.c.l.b16 %v1915
      %v1983 = vunpack.c.h.b16 %v1915
      %v1984 = vunpack.c.l.b16 %v1916
      %v1985 = vunpack.c.h.b16 %v1916
      %v1986 = vunpack.c.l.b16 %v1917
      %v1987 = vunpack.c.h.b16 %v1917
      %v1988 = vunpack.c.l.b16 %v1918
      %v1989 = vunpack.c.h.b16 %v1918
      %v1990 = vunpack.c.l.b16 %v1919
      %v1991 = vunpack.c.h.b16 %v1919
      %v1992 = vunpack.c.l.b16 %v1920
      %v1993 = vunpack.c.h.b16 %v1920
      %v1994 = vunpack.c.l.b16 %v1921
      %v1995 = vunpack.c.h.b16 %v1921
      %v1996 = vunpack.c.l.b16 %v1922
      %v1997 = vunpack.c.h.b16 %v1922
      %v1998 = vunpack.c.l.b16 %v1923
      %v1999 = vunpack.c.h.b16 %v1923
      %v2000 = vunpack.c.l.b16 %v1924
      %v2001 = vunpack.c.h.b16 %v1924
      %v2002 = vunpack.c.l.b16 %v1925
      %v2003 = vunpack.c.h.b16 %v1925
      %v2004 = vunpack.c.l.b16 %v1926
      %v2005 = vunpack.c.h.b16 %v1926
      %v2006 = vpack.c.b16 %v1960, %v1958
      %v2007 = vpack.c.b16 %v1961, %v1959
      %v2008 = vpack.c.b16 %v1964, %v1962
      %v2009 = vpack.c.b16 %v1965, %v1963
      %v2010 = vpack.c.b16 %v1968, %v1966
      %v2011 = vpack.c.b16 %v1969, %v1967
      %v2012 = vpack.c.b16 %v1972, %v1970
      %v2013 = vpack.c.b16 %v1973, %v1971
      %v2014 = vpack.c.b16 %v1976, %v1974
      %v2015 = vpack.c.b16 %v1977, %v1975
      %v2016 = vpack.c.b16 %v1980, %v1978
      %v2017 = vpack.c.b16 %v1981, %v1979
      %v2018 = vpack.c.b16 %v1984, %v1982
      %v2019 = vpack.c.b16 %v1985, %v1983
      %v2020 = vpack.c.b16 %v1988, %v1986
      %v2021 = vpack.c.b16 %v1989, %v1987
      %v2022 = vpack.c.b16 %v1992, %v1990
      %v2023 = vpack.c.b16 %v1993, %v1991
      %v2024 = vpack.c.b16 %v1996, %v1994
      %v2025 = vpack.c.b16 %v1997, %v1995
      %v2026 = vpack.c.b16 %v2000, %v1998
      %v2027 = vpack.c.b16 %v2001, %v1999
      %v2028 = vpack.c.b16 %v2004, %v2002
      %v2029 = vpack.c.b16 %v2005, %v2003
      %v2055 = vsel %vm996, %v1932, 0
      %2057 = vmatpush.bf16.msra.mxu0 %v2020
      %2058 = vmatpush.bf16.msra.mxu0 %v2018
      %2059 = vmatpush.bf16.msra.mxu0 %v2016
      %2060 = vmatpush.bf16.msra.mxu0 %v2014
      %2061 = vmatpush.bf16.msra.mxu0 %v2012
      %2062 = vmatpush.bf16.msra.mxu0 %v2010
      %2063 = vmatpush.bf16.msra.mxu0 %v2008
      %2064 = vmatpush.bf16.msra.mxu0 %v2006
      %2065 = vmatmul.bf16.gmra.mxu0 %v1929
      %v2066 = vpop.f32.mrf.mxu0
      %v2067 = vadd.f32 0.0, %v2066
      %v2068 = vpop.f32.mrf.mxu0
      %2069 = vdwg.mxu0
      %2070 = vmatpush.bf16.msra.mxu0 0
      %2071 = vmatpush.bf16.msra.mxu0 0
      %2072 = vmatpush.bf16.msra.mxu0 0
      %2073 = vmatpush.bf16.msra.mxu0 0
      %2074 = vmatpush.bf16.msra.mxu0 %v2028
      %2075 = vmatpush.bf16.msra.mxu0 %v2026
      %2076 = vmatpush.bf16.msra.mxu0 %v2024
      %2077 = vmatpush.bf16.msra.mxu0 %v2022
      %2078 = vmatmul.bf16.gmra.mxu0 %v2055
      %v2079 = vpop.f32.mrf.mxu0
      %v2080 = vadd.f32 %v2067, %v2079
      %v2081 = vpop.f32.mrf.mxu0
      %2082 = vdwg.mxu0
      %2083 = vmatpush.bf16.msra.mxu0 %v2021
      %2084 = vmatpush.bf16.msra.mxu0 %v2019
      %2085 = vmatpush.bf16.msra.mxu0 %v2017
      %2086 = vmatpush.bf16.msra.mxu0 %v2015
      %2087 = vmatpush.bf16.msra.mxu0 %v2013
      %2088 = vmatpush.bf16.msra.mxu0 %v2011
      %2089 = vmatpush.bf16.msra.mxu0 %v2009
      %2090 = vmatpush.bf16.msra.mxu0 %v2007
      %2091 = vmatmul.bf16.gmra.mxu0 %v1929
      %v2092 = vpop.f32.mrf.mxu0
      %v2093 = vadd.f32 0.0, %v2092
      %v2094 = vpop.f32.mrf.mxu0
      %2095 = vdwg.mxu0
      %2096 = vmatpush.bf16.msra.mxu0 0
      %2097 = vmatpush.bf16.msra.mxu0 0
      %2098 = vmatpush.bf16.msra.mxu0 0
      %2099 = vmatpush.bf16.msra.mxu0 0
      %2100 = vmatpush.bf16.msra.mxu0 %v2029
      %2101 = vmatpush.bf16.msra.mxu0 %v2027
      %2102 = vmatpush.bf16.msra.mxu0 %v2025
      %2103 = vmatpush.bf16.msra.mxu0 %v2023
      %2104 = vmatmul.bf16.gmra.mxu0 %v2055
      %v2105 = vpop.f32.mrf.mxu0
      %v2106 = vadd.f32 %v2093, %v2105
      %v2107 = vpop.f32.mrf.mxu0
      %2108 = vdwg.mxu0
      %v2109 = vadd.f32 %v1900, %v2080
      %v2110 = vadd.f32 %v1901, %v2106
      %s2111 = scalar_lea.vmem %s3, 768
      %v2112 = vld [vmem:[%s2111] sm:$0xff]
      %v2113 = vld [vmem:[%s2111 + $0x8] sm:$0xff]
      %v2114 = vld [vmem:[%s2111 + $0x10] sm:$0xff]
      %v2115 = vld [vmem:[%s2111 + $0x18] sm:$0xff]
      %v2116 = vld [vmem:[%s2111 + $0x20] sm:$0xff]
      %v2117 = vld [vmem:[%s2111 + $0x28] sm:$0xff]
      %v2118 = vld [vmem:[%s2111 + $0x30] sm:$0xff]
      %v2119 = vld [vmem:[%s2111 + $0x38] sm:$0xff]
      %v2120 = vld [vmem:[%s2111 + $0x40] sm:$0xff]
      %v2121 = vld [vmem:[%s2111 + $0x48] sm:$0xff]
      %v2122 = vld [vmem:[%s2111 + $0x50] sm:$0xff]
      %v2123 = vld [vmem:[%s2111 + $0x58] sm:$0xff]
      %v2124 = vld [vmem:[%s2111 + $0x60] sm:$0xff]
      %v2125 = vld [vmem:[%s2111 + $0x68] sm:$0xff]
      %v2126 = vld [vmem:[%s2111 + $0x70] sm:$0xff]
      %v2127 = vld [vmem:[%s2111 + $0x78] sm:$0xff]
      %v2128 = vld [vmem:[%s2111 + $0x80] sm:$0xff]
      %v2129 = vld [vmem:[%s2111 + $0x88] sm:$0xff]
      %v2130 = vld [vmem:[%s2111 + $0x90] sm:$0xff]
      %v2131 = vld [vmem:[%s2111 + $0x98] sm:$0xff]
      %v2132 = vld [vmem:[%s2111 + $0xa0] sm:$0xff]
      %v2133 = vld [vmem:[%s2111 + $0xa8] sm:$0xff]
      %v2134 = vld [vmem:[%s2111 + $0xb0] sm:$0xff]
      %v2135 = vld [vmem:[%s2111 + $0xb8] sm:$0xff]
      %v2136 = vrot.slane %v1303, 2
      %v2137 = vrot.slane %v1304, 2
      %v2163 = vunpack.c.l.b16 %v2112
      %v2164 = vunpack.c.h.b16 %v2112
      %v2165 = vunpack.c.l.b16 %v2113
      %v2166 = vunpack.c.h.b16 %v2113
      %v2167 = vunpack.c.l.b16 %v2114
      %v2168 = vunpack.c.h.b16 %v2114
      %v2169 = vunpack.c.l.b16 %v2115
      %v2170 = vunpack.c.h.b16 %v2115
      %v2171 = vunpack.c.l.b16 %v2116
      %v2172 = vunpack.c.h.b16 %v2116
      %v2173 = vunpack.c.l.b16 %v2117
      %v2174 = vunpack.c.h.b16 %v2117
      %v2175 = vunpack.c.l.b16 %v2118
      %v2176 = vunpack.c.h.b16 %v2118
      %v2177 = vunpack.c.l.b16 %v2119
      %v2178 = vunpack.c.h.b16 %v2119
      %v2179 = vunpack.c.l.b16 %v2120
      %v2180 = vunpack.c.h.b16 %v2120
      %v2181 = vunpack.c.l.b16 %v2121
      %v2182 = vunpack.c.h.b16 %v2121
      %v2183 = vunpack.c.l.b16 %v2122
      %v2184 = vunpack.c.h.b16 %v2122
      %v2185 = vunpack.c.l.b16 %v2123
      %v2186 = vunpack.c.h.b16 %v2123
      %v2187 = vunpack.c.l.b16 %v2124
      %v2188 = vunpack.c.h.b16 %v2124
      %v2189 = vunpack.c.l.b16 %v2125
      %v2190 = vunpack.c.h.b16 %v2125
      %v2191 = vunpack.c.l.b16 %v2126
      %v2192 = vunpack.c.h.b16 %v2126
      %v2193 = vunpack.c.l.b16 %v2127
      %v2194 = vunpack.c.h.b16 %v2127
      %v2195 = vunpack.c.l.b16 %v2128
      %v2196 = vunpack.c.h.b16 %v2128
      %v2197 = vunpack.c.l.b16 %v2129
      %v2198 = vunpack.c.h.b16 %v2129
      %v2199 = vunpack.c.l.b16 %v2130
      %v2200 = vunpack.c.h.b16 %v2130
      %v2201 = vunpack.c.l.b16 %v2131
      %v2202 = vunpack.c.h.b16 %v2131
      %v2203 = vunpack.c.l.b16 %v2132
      %v2204 = vunpack.c.h.b16 %v2132
      %v2205 = vunpack.c.l.b16 %v2133
      %v2206 = vunpack.c.h.b16 %v2133
      %v2207 = vunpack.c.l.b16 %v2134
      %v2208 = vunpack.c.h.b16 %v2134
      %v2209 = vunpack.c.l.b16 %v2135
      %v2210 = vunpack.c.h.b16 %v2135
      %v2211 = vpack.c.b16 %v2165, %v2163
      %v2212 = vpack.c.b16 %v2166, %v2164
      %v2213 = vpack.c.b16 %v2169, %v2167
      %v2214 = vpack.c.b16 %v2170, %v2168
      %v2215 = vpack.c.b16 %v2173, %v2171
      %v2216 = vpack.c.b16 %v2174, %v2172
      %v2217 = vpack.c.b16 %v2177, %v2175
      %v2218 = vpack.c.b16 %v2178, %v2176
      %v2219 = vpack.c.b16 %v2181, %v2179
      %v2220 = vpack.c.b16 %v2182, %v2180
      %v2221 = vpack.c.b16 %v2185, %v2183
      %v2222 = vpack.c.b16 %v2186, %v2184
      %v2223 = vpack.c.b16 %v2189, %v2187
      %v2224 = vpack.c.b16 %v2190, %v2188
      %v2225 = vpack.c.b16 %v2193, %v2191
      %v2226 = vpack.c.b16 %v2194, %v2192
      %v2227 = vpack.c.b16 %v2197, %v2195
      %v2228 = vpack.c.b16 %v2198, %v2196
      %v2229 = vpack.c.b16 %v2201, %v2199
      %v2230 = vpack.c.b16 %v2202, %v2200
      %v2231 = vpack.c.b16 %v2205, %v2203
      %v2232 = vpack.c.b16 %v2206, %v2204
      %v2233 = vpack.c.b16 %v2209, %v2207
      %v2234 = vpack.c.b16 %v2210, %v2208
      %v2260 = vsel %vm996, %v2137, 0
      %2262 = vmatpush.bf16.msra.mxu0 %v2225
      %2263 = vmatpush.bf16.msra.mxu0 %v2223
      %2264 = vmatpush.bf16.msra.mxu0 %v2221
      %2265 = vmatpush.bf16.msra.mxu0 %v2219
      %2266 = vmatpush.bf16.msra.mxu0 %v2217
      %2267 = vmatpush.bf16.msra.mxu0 %v2215
      %2268 = vmatpush.bf16.msra.mxu0 %v2213
      %2269 = vmatpush.bf16.msra.mxu0 %v2211
      %2270 = vmatmul.bf16.gmra.mxu0 %v2136
      %v2271 = vpop.f32.mrf.mxu0
      %v2272 = vadd.f32 0.0, %v2271
      %v2273 = vpop.f32.mrf.mxu0
      %2274 = vdwg.mxu0
      %2275 = vmatpush.bf16.msra.mxu0 0
      %2276 = vmatpush.bf16.msra.mxu0 0
      %2277 = vmatpush.bf16.msra.mxu0 0
      %2278 = vmatpush.bf16.msra.mxu0 0
      %2279 = vmatpush.bf16.msra.mxu0 %v2233
      %2280 = vmatpush.bf16.msra.mxu0 %v2231
      %2281 = vmatpush.bf16.msra.mxu0 %v2229
      %2282 = vmatpush.bf16.msra.mxu0 %v2227
      %2283 = vmatmul.bf16.gmra.mxu0 %v2260
      %v2284 = vpop.f32.mrf.mxu0
      %v2285 = vadd.f32 %v2272, %v2284
      %v2286 = vpop.f32.mrf.mxu0
      %2287 = vdwg.mxu0
      %2288 = vmatpush.bf16.msra.mxu0 %v2226
      %2289 = vmatpush.bf16.msra.mxu0 %v2224
      %2290 = vmatpush.bf16.msra.mxu0 %v2222
      %2291 = vmatpush.bf16.msra.mxu0 %v2220
      %2292 = vmatpush.bf16.msra.mxu0 %v2218
      %2293 = vmatpush.bf16.msra.mxu0 %v2216
      %2294 = vmatpush.bf16.msra.mxu0 %v2214
      %2295 = vmatpush.bf16.msra.mxu0 %v2212
      %2296 = vmatmul.bf16.gmra.mxu0 %v2136
      %v2297 = vpop.f32.mrf.mxu0
      %v2298 = vadd.f32 0.0, %v2297
      %v2299 = vpop.f32.mrf.mxu0
      %2300 = vdwg.mxu0
      %2301 = vmatpush.bf16.msra.mxu0 0
      %2302 = vmatpush.bf16.msra.mxu0 0
      %2303 = vmatpush.bf16.msra.mxu0 0
      %2304 = vmatpush.bf16.msra.mxu0 0
      %2305 = vmatpush.bf16.msra.mxu0 %v2234
      %2306 = vmatpush.bf16.msra.mxu0 %v2232
      %2307 = vmatpush.bf16.msra.mxu0 %v2230
      %2308 = vmatpush.bf16.msra.mxu0 %v2228
      %2309 = vmatmul.bf16.gmra.mxu0 %v2260
      %v2310 = vpop.f32.mrf.mxu0
      %v2311 = vadd.f32 %v2298, %v2310
      %v2312 = vpop.f32.mrf.mxu0
      %2313 = vdwg.mxu0
      %v2314 = vadd.f32 %v2109, %v2285
      %v2315 = vadd.f32 %v2110, %v2311
      %v2316 = vld [vmem:[%s4] sm:$0x3]
      %v2318 = vperm.slane %v2316, 0
      %v2319 = vperm.slane %v2316, 1
      %v2322 = vadd.f32 %v2314, %v2318
      %v2323 = vadd.f32 %v2315, %v2319
      %v2324 = vmax.f32 %v2322, 0.0
      %v2325 = vmax.f32 %v2323, 0.0
      %v2328 = vrot.slane %v2325, 4
      %v2329 = vsel %vm591, %v2324, %v2328
      %v2330 = vsel %vm591, %v2328, %v2324
      %v2331 = vrot.slane %v2330, 4
      %v2335 = vunpack.c.l.s4 1966171168
      %v2336 = vunpack.c.0.s8 %v2335
      %v2337 = vperm.slane %v2329, %v2336
      %v2339 = vunpack.c.l.s4 1966171168
      %v2340 = vunpack.c.0.s8 %v2339
      %v2341 = vperm.slane %v2331, %v2340
      %v2344 = vrot.slane %v2337, 4
      %v2345 = vrot.slane %v2341, 4
      %v2348 = vmax.f32 %v2337, %v2344
      %v2349 = vmax.f32 %v2341, %v2345
      %v2352 = vrot.slane %v2348, 2
      %v2353 = vrot.slane %v2349, 2
      %2356 = vrot.lane.b32.xlu0 %v2348, 64
      %v2357 = vpop.permute.xlu0 %2356
      %2358 = vrot.lane.b32.xlu0 %v2349, 64
      %v2359 = vpop.permute.xlu0 %2358
      %v2360 = vrot.slane %v2357, 2
      %v2361 = vrot.slane %v2359, 2
      %v2366 = vrot.slane %v2357, 4
      %v2367 = vsel %vm707, %v2366, %v2348
      %v2369 = vunpack.c.l.s4 1934713408
      %v2370 = vunpack.c.0.s8 %v2369
      %v2371 = vperm.slane %v2367, %v2370
      %v2372 = vrot.slane %v2371, 4
      %v2373 = vsel %vm707, 0.0, %v2372
      %v2374 = vrot.slane %v2360, 4
      %v2375 = vsel %vm707, %v2374, %v2352
      %v2377 = vunpack.c.l.s4 1934713408
      %v2378 = vunpack.c.0.s8 %v2377
      %v2379 = vperm.slane %v2375, %v2378
      %v2380 = vrot.slane %v2379, 4
      %v2381 = vsel %vm707, 0.0, %v2380
      %v2382 = vrot.slane %v2359, 4
      %v2383 = vsel %vm707, %v2382, %v2349
      %v2385 = vunpack.c.l.s4 1934713408
      %v2386 = vunpack.c.0.s8 %v2385
      %v2387 = vperm.slane %v2383, %v2386
      %v2388 = vrot.slane %v2387, 4
      %v2389 = vsel %vm707, 0.0, %v2388
      %v2390 = vrot.slane %v2361, 4
      %v2391 = vsel %vm707, %v2390, %v2353
      %v2393 = vunpack.c.l.s4 1934713408
      %v2394 = vunpack.c.0.s8 %v2393
      %v2395 = vperm.slane %v2391, %v2394
      %v2396 = vrot.slane %v2395, 4
      %v2397 = vsel %vm707, 0.0, %v2396
      %2406 = vrot.lane.b32.xlu0 %v2371, 96
      %v2407 = vpop.permute.xlu0 %2406
      %2408 = vrot.lane.b32.xlu0 %v2379, 96
      %v2409 = vpop.permute.xlu0 %2408
      %2410 = vrot.lane.b32.xlu0 %v2373, 96
      %v2411 = vpop.permute.xlu0 %2410
      %2412 = vrot.lane.b32.xlu0 %v2381, 96
      %v2413 = vpop.permute.xlu0 %2412
      %2414 = vrot.lane.b32.xlu0 %v2387, 96
      %v2415 = vpop.permute.xlu0 %2414
      %2416 = vrot.lane.b32.xlu0 %v2395, 96
      %v2417 = vpop.permute.xlu0 %2416
      %2418 = vrot.lane.b32.xlu0 %v2389, 96
      %v2419 = vpop.permute.xlu0 %2418
      %2420 = vrot.lane.b32.xlu0 %v2397, 96
      %v2421 = vpop.permute.xlu0 %2420
      %v2430 = vmax.f32 %v2371, %v2407
      %v2431 = vmax.f32 %v2379, %v2409
      %v2432 = vmax.f32 %v2373, %v2411
      %v2433 = vmax.f32 %v2381, %v2413
      %v2434 = vmax.f32 %v2387, %v2415
      %v2435 = vmax.f32 %v2395, %v2417
      %v2436 = vmax.f32 %v2389, %v2419
      %v2437 = vmax.f32 %v2397, %v2421
      %v2438 = vrot.slane %v2432, 4
      %v2439 = vsel %vm707, %v2438, %v2430
      %v2441 = vunpack.c.l.s4 1934713408
      %v2442 = vunpack.c.0.s8 %v2441
      %v2443 = vperm.slane %v2439, %v2442
      %v2444 = vrot.slane %v2443, 4
      %v2445 = vsel %vm707, 0.0, %v2444
      %v2446 = vrot.slane %v2436, 4
      %v2447 = vsel %vm707, %v2446, %v2434
      %v2449 = vunpack.c.l.s4 1934713408
      %v2450 = vunpack.c.0.s8 %v2449
      %v2451 = vperm.slane %v2447, %v2450
      %v2452 = vrot.slane %v2451, 4
      %v2453 = vsel %vm707, 0.0, %v2452
      %v2454 = vrot.slane %v2433, 4
      %v2455 = vsel %vm707, %v2454, %v2431
      %v2457 = vunpack.c.l.s4 1934713408
      %v2458 = vunpack.c.0.s8 %v2457
      %v2459 = vperm.slane %v2455, %v2458
      %v2460 = vrot.slane %v2459, 4
      %v2461 = vsel %vm707, 0.0, %v2460
      %v2462 = vrot.slane %v2437, 4
      %v2463 = vsel %vm707, %v2462, %v2435
      %v2465 = vunpack.c.l.s4 1934713408
      %v2466 = vunpack.c.0.s8 %v2465
      %v2467 = vperm.slane %v2463, %v2466
      %v2468 = vrot.slane %v2467, 4
      %v2469 = vsel %vm707, 0.0, %v2468
      %2472 = vst [vmem:[#allocation1] ss:$4 sm:$0xff] %v2443
      %s2473 = scalar_lea.vmem [#allocation1], 1
      %2474 = vst [vmem:[%s2473] ss:$4 sm:$0xff] %v2451
      %v2475 = vld.sshfl [vmem:[#allocation1] sm:$0xff pattern:$0x73625140]
      %2479 = vst [vmem:[#allocation1] ss:$4 sm:$0xff] %v2445
      %s2480 = scalar_lea.vmem [#allocation1], 1
      %2481 = vst [vmem:[%s2480] ss:$4 sm:$0xff] %v2453
      %v2482 = vld.sshfl [vmem:[#allocation1] sm:$0xff pattern:$0x73625140]
      %2483 = vrot.lane.b32.xlu0 %v2482, 32
      %v2484 = vpop.permute.xlu0 %2483
      %2488 = vst [vmem:[#allocation1] ss:$4 sm:$0xff] %v2459
      %s2489 = scalar_lea.vmem [#allocation1], 1
      %2490 = vst [vmem:[%s2489] ss:$4 sm:$0xff] %v2467
      %v2491 = vld.sshfl [vmem:[#allocation1] sm:$0xff pattern:$0x73625140]
      %2492 = vrot.lane.b32.xlu0 %v2491, 64
      %v2493 = vpop.permute.xlu0 %2492
      %2497 = vst [vmem:[#allocation1] ss:$4 sm:$0xff] %v2461
      %s2498 = scalar_lea.vmem [#allocation1], 1
      %2499 = vst [vmem:[%s2498] ss:$4 sm:$0xff] %v2469
      %v2500 = vld.sshfl [vmem:[#allocation1] sm:$0xff pattern:$0x73625140]
      %2501 = vrot.lane.b32.xlu0 %v2500, 96
      %v2502 = vpop.permute.xlu0 %2501
      %v2504 = vsel %vm1249, %v2475, %v2484
      %v2505 = vsel %vm996, %v2504, %v2493
      %v2506 = vsel %vm1256, %v2505, %v2502
      %2507 = vst [vmem:[%s222] sm:$0xf] %v2506
      %p2508 = scmp.lt.s32.totalorder %s16, 1
      %s2509 = scalar_select %p2508, %s16, 1
      %s2510 = smul.addr %s2509, 4
      %s2511 = scalar_lea.vmem %s5, %s2510
      // Predicated region
      $region41: #{conv_mnist_forward.1} parent=39 // pred_check
        %p2512 = pneg %p144
      $region42: #{conv_mnist_forward.1} parent=39 // pred_check_branch
        %2514 = sbr.rel (%p2512) target = $region44
      $region43: #{conv_mnist_forward.1} parent=39 // pred_region
        _
      $region44: #{conv_mnist_forward.1} parent=39 // pred_fallthru
        _
    $region40: #{conv_mnist_forward.1} parent=5 // pred_fallthru
      _
    %p2515 = scmp.le.s32.totalorder 2, %s11
    // Predicated region
    $region45: #{conv_mnist_forward.1} parent=5 // pred_check
      %p2516 = pneg %p2515
    $region46: #{conv_mnist_forward.1} parent=5 // pred_check_branch
      %2518 = sbr.rel (%p2516) target = $region48
    $region47: #{conv_mnist_forward.1} parent=5 // pred_region
      %s2519 = ssub.s32 %s11, 2
      // Predicated region
      $region49: #{conv_mnist_forward.1} parent=47 // pred_check
        %p2520 = pneg %p150
      $region50: #{conv_mnist_forward.1} parent=47 // pred_check_branch
        %2522 = sbr.rel (%p2520) target = $region52
      $region51: #{conv_mnist_forward.1} parent=47 // pred_region
        %p2523 = scmp.lt.s32.totalorder %s17, 1
        %s2524 = scalar_select %p2523, %s17, 1
        %s2525 = smul.addr %s2524, 4
        %s2526 = scalar_lea.vmem %s5, %s2525
      $region52: #{conv_mnist_forward.1} parent=47 // pred_fallthru
        _
    $region48: #{conv_mnist_forward.1} parent=5 // pred_fallthru
      _
  $region6: #{conv_mnist_forward.1} parent=0 // loop_footer
    %s15 = sadd.s32 1, %s11
  $region7: #{conv_mnist_forward.1} parent=0 // loop_footer_branch
    %10 = sbr.rel target = $region3
  $region8: #{conv_mnist_forward.1} parent=0 // loop_exit
    _

</llo_original>
